<compile_context>
chip_gen: v6e
topology: v6e:2x2x1
jax: 0.10.0
libtpu: 0.0.40
codegen_flags: <defaults>
</compile_context>

<pallas_src>
import functools
import math

import jax
import jax.numpy as jnp
from jax.experimental import pallas as pl
from jax.experimental.pallas import tpu as pltpu

_EPS = 1e-5
_LANE = 128


def _round_up(v, m):
    return ((v + m - 1) // m) * m


def _device_vmem_bytes():
    """Physical VMEM of the current TPU (fallback: 64 MiB = v7x per-TensorCore)."""
    try:
        cap = int(getattr(pltpu.get_tpu_info(), "vmem_capacity_bytes", 0))
        if cap > 0:
            return cap
    except Exception:
        pass
    return 64 * 1024 * 1024


def _pick_tile_h(n, h_out, w_out, halo, w_p, cin_p, t_co, ksize, vmem_budget):
    """Pick the output-row tile so that N*T >= ~8 grid steps (>=2 per v7x core),
    the per-call matmul M-dim stays moderate, and double-buffered blocks fit VMEM."""
    target_steps = 8
    target_rows = 256
    tiles_needed = max(1, -(-target_steps // max(n, 1)))
    tile_h = max(1, -(-h_out // tiles_needed))
    tile_h = min(tile_h, max(1, target_rows // max(w_out, 1)), h_out)

    def step_bytes(th):
        slab = (th + halo) * w_p * cin_p * 2          # bf16 haloed input slab
        wblk = ksize * ksize * cin_p * t_co * 2       # bf16 weight tile
        oblk = th * w_out * t_co * 2                  # bf16 output tile
        return 2 * (slab + wblk + oblk) + 2 * t_co * 4

    while tile_h > 1 and step_bytes(tile_h) > vmem_budget:
        tile_h -= 1
    t = -(-h_out // tile_h)
    return tile_h, t, step_bytes(tile_h)


def _conv_bn_relu_kernel(x_ref, w_ref, shift_ref, o_ref, *, ksize, dilation,
                         tile_h, w_out):
    """Fused Conv (K*K shifted matmuls) -> BN(eval, folded) -> ReLU on one row-slab.

    x_ref:     (tile_h + halo, W_p, Cin_p)  bf16 haloed input row-slab
    w_ref:     (K, K, Cin_p, t_co)          bf16 conv weight with BN scale folded in
    shift_ref: (1, t_co)                    f32  folded shift = beta - mean*scale + b*scale
    o_ref:     (tile_h * W_out, t_co)       bf16 output rows
    """
    m, cout_t = o_ref.shape
    cin_p = x_ref.shape[-1]
    acc = jnp.zeros((m, cout_t), jnp.float32)
    for kh in range(ksize):
        for kw in range(ksize):
            xs = x_ref[kh * dilation:kh * dilation + tile_h,
                       kw * dilation:kw * dilation + w_out, :]
            acc = acc + jnp.dot(xs.reshape(m, cin_p), w_ref[kh, kw],
                                preferred_element_type=jnp.float32)
    o_ref[...] = jnp.maximum(acc + shift_ref[...], 0.0).astype(o_ref.dtype)


def _conv_layer_eval_nhwc(feat, p, *, ksize, pad=True, dilation=1):
    """Eval-mode _ConvLayer (preact=False) on a channel-padded bf16 NHWC tensor.

    feat: (N, H, W, Cin_p) bf16, channels zero-padded to a 128 multiple.
    Returns (N, H_out, W_out, Cout_p) bf16; padded output channels are exactly zero.
    """
    N, H, W, cin_p = feat.shape
    cout, cin_true = p["w"].shape[0], p["w"].shape[1]
    assert cin_true <= cin_p
    K = ksize
    pad_size = (K // 2) if pad else 0                 # matches PyTorch: pad = ksize // 2
    halo = dilation * (K - 1)
    H_out = H + 2 * pad_size - halo
    W_out = W + 2 * pad_size - halo
    cout_p = _round_up(cout, _LANE)
    t_co = 256 if (cout_p % 256 == 0) else _LANE      # match 256-wide MXU when possible
    n_co = cout_p // t_co

    # Fold BN(eval) scale into the conv weight; fold conv bias + BN shift into one row:
    #   relu(((conv + b) - mean) * scale + beta) == relu(conv.(w*scale) + shift)
    scale = p["gamma"] / jnp.sqrt(p["running_var"] + _EPS)                    # (Cout,)
    shift = p["beta"] - p["running_mean"] * scale + p["b"] * scale            # (Cout,)
    w_t = jnp.transpose(p["w"], (2, 3, 1, 0)) * scale[None, None, None, :]    # (K,K,Cin,Cout)
    w_t = jnp.pad(w_t, ((0, 0), (0, 0), (0, cin_p - cin_true), (0, cout_p - cout)))
    w_t = w_t.astype(jnp.bfloat16)
    shift_row = jnp.pad(shift, (0, cout_p - cout)).astype(jnp.float32).reshape(1, cout_p)

    # ---- tiling ----
    W_p = _round_up(W + 2 * pad_size, 8)              # sublane-aligned padded width
    vmem_cap = _device_vmem_bytes()
    vmem_budget = max(16 * 1024 * 1024, (vmem_cap - 16 * 1024 * 1024) // 2)
    tile_h, T, step_bytes = _pick_tile_h(N, H_out, W_out, halo, W_p, cin_p, t_co, K,
                                         vmem_budget)
    m = tile_h * W_out
    NT = N * T

    # ---- bf16 glue: spatial pad + overlapping row-window gather (halo rows only) ----
    rows_needed = T * tile_h + halo
    extra_rows = max(0, rows_needed - (H + 2 * pad_size))
    xpad = jnp.pad(feat, ((0, 0), (pad_size, pad_size + extra_rows),
                          (pad_size, W_p - W - pad_size), (0, 0)))
    row_idx = (jnp.arange(T, dtype=jnp.int32)[:, None] * tile_h
               + jnp.arange(tile_h + halo, dtype=jnp.int32)[None, :])
    slabs = jnp.take(xpad, row_idx, axis=1).reshape(NT, tile_h + halo, W_p, cin_p)

    kernel = functools.partial(_conv_bn_relu_kernel, ksize=K, dilation=dilation,
                               tile_h=tile_h, w_out=W_out)

    flops = 2 * NT * m * (K * K * cin_p) * cout_p
    bytes_accessed = (NT * (tile_h + halo) * W_p * cin_p * 2
                      + K * K * cin_p * cout_p * 2 * (NT if n_co > 1 else 1)
                      + cout_p * 4 + NT * m * cout_p * 2)
    cost = pl.CostEstimate(flops=flops, transcendentals=0, bytes_accessed=bytes_accessed)

    vmem_limit = int(min(vmem_cap - 8 * 1024 * 1024,
                         max(32 * 1024 * 1024, 2 * step_bytes)))

    # Grid: (row-slab, Cout-tile); Cout innermost so the haloed slab is not re-DMA'd.
    # TODO(synk): the grid-invariant weight/shift blocks could use
    #             pipeline_mode=pl.Buffered(1) to reclaim their double-buffer VMEM;
    #             left at the default since Pallas only re-DMAs them when their block
    #             index changes and the saving here is small.
    out_flat = pl.pallas_call(
        kernel,
        out_shape=jax.ShapeDtypeStruct((NT, m, cout_p), jnp.bfloat16),
        grid=(NT, n_co),
        in_specs=[
            pl.BlockSpec((None, tile_h + halo, W_p, cin_p),
                         lambda i, j: (i, 0, 0, 0)),                  # haloed input slab
            pl.BlockSpec((K, K, cin_p, t_co), lambda i, j: (0, 0, 0, j)),  # scaled weight
            pl.BlockSpec((1, t_co), lambda i, j: (0, j)),             # folded shift
        ],
        out_specs=pl.BlockSpec((None, m, t_co), lambda i, j: (i, 0, j)),
        compiler_params=pltpu.CompilerParams(
            dimension_semantics=("parallel", "parallel"),
            vmem_limit_bytes=vmem_limit),
        cost_estimate=cost,
    )(slabs, w_t, shift_row)

    out = out_flat.reshape(N, T * tile_h, W_out, cout_p)
    if T * tile_h != H_out:
        out = out[:, :H_out]
    return out


def conv_block_forward(x_nchw, layer_params, *, ksize, pad=True, dilation=1):
    """Eval-mode ConvBlock forward (NCHW in / NCHW out, PyTorch convention)."""
    feat = jnp.transpose(x_nchw, (0, 2, 3, 1)).astype(jnp.bfloat16)   # NCHW -> NHWC, bf16
    cin = feat.shape[-1]
    cin_p = _round_up(cin, _LANE)
    if cin_p != cin:                                                  # lane-dense channels
        feat = jnp.pad(feat, ((0, 0), (0, 0), (0, 0), (0, cin_p - cin)))
    for p in layer_params:
        feat = _conv_layer_eval_nhwc(feat, p, ksize=ksize, pad=pad, dilation=dilation)
    cout_last = layer_params[-1]["w"].shape[0]
    feat = feat[..., :cout_last]                                      # slice padding once
    return jnp.transpose(feat, (0, 3, 1, 2)).astype(jnp.float32)      # back to NCHW


# ----------------------------- pure-JAX reference ------------------------------------
def _ref_conv_layer(x, p, *, ksize, pad=True, dilation=1):
    pad_size = (ksize // 2) if pad else 0
    y = jax.lax.conv_general_dilated(
        x, p["w"], window_strides=(1, 1),
        padding=[(pad_size, pad_size), (pad_size, pad_size)],
        rhs_dilation=(dilation, dilation),
        dimension_numbers=("NCHW", "OIHW", "NCHW"),
        precision=jax.lax.Precision.HIGHEST)
    y = y + p["b"].reshape(1, -1, 1, 1)
    scale = p["gamma"] / jnp.sqrt(p["running_var"] + _EPS)
    shift = p["beta"] - p["running_mean"] * scale
    y = y * scale.reshape(1, -1, 1, 1) + shift.reshape(1, -1, 1, 1)
    return jnp.maximum(y, 0.0)


def _ref_conv_block(x, layer_params, *, ksize, pad=True, dilation=1):
    for p in layer_params:
        x = _ref_conv_layer(x, p, ksize=ksize, pad=pad, dilation=dilation)
    return x


def _make_layer_params(key, in_ch, out_ch, ksize):
    ks = jax.random.split(key, 6)
    fan_in = in_ch * ksize * ksize
    return dict(
        gamma=1.0 + 0.1 * jax.random.normal(ks[0], (out_ch,), jnp.float32),
        beta=0.1 * jax.random.normal(ks[1], (out_ch,), jnp.float32),
        running_mean=0.1 * jax.random.normal(ks[2], (out_ch,), jnp.float32),
        running_var=jax.random.uniform(ks[3], (out_ch,), jnp.float32, 0.5, 1.5),
        w=jax.random.normal(ks[4], (out_ch, in_ch, ksize, ksize), jnp.float32)
          / math.sqrt(fan_in),
        b=0.1 * jax.random.normal(ks[5], (out_ch,), jnp.float32),
    )


if __name__ == "__main__":
    key = jax.random.PRNGKey(0)
    kx, k1, k2 = jax.random.split(key, 3)

    N, Cin, H, W, K = 2, 4, 16, 16, 3
    unit_ch = [8, 8]                       # ConvBlock(in_ch=4, unit_ch=[8, 8], ksize=3)
    x = jax.random.normal(kx, (N, Cin, H, W), jnp.float32)

    layer_params = []
    in_ch = Cin
    for kk, oc in zip((k1, k2), unit_ch):
        layer_params.append(_make_layer_params(kk, in_ch, oc, K))
        in_ch = oc

    fwd = jax.jit(functools.partial(conv_block_forward, ksize=K, pad=True, dilation=1))
    out = jax.block_until_ready(fwd(x, layer_params))

    ref = _ref_conv_block(x, layer_params, ksize=K, pad=True, dilation=1)
    assert out.shape == (N, unit_ch[-1], H, W), out.shape
    max_err = float(jnp.max(jnp.abs(out - ref)))
    # bf16 operands + bf16 inter-layer chain vs f32 HIGHEST reference
    assert jnp.allclose(out, ref, atol=1e-1, rtol=5e-2), f"mismatch, max_abs_err={max_err}"

    print("KERNEL_OK")
</pallas_src>

<mosaic_0001>
module attributes {stable_mosaic.version = 11 : i64} {
  func.func @_conv_bn_relu_kernel(%arg0: i32, %arg1: i32, %arg2: memref<1x6x24x128xbf16, #tpu.memory_space<vmem>>, %arg3: memref<3x3x128x128xbf16, #tpu.memory_space<vmem>>, %arg4: memref<1x128xf32, #tpu.memory_space<vmem>>, %arg5: memref<1x64x128xbf16, #tpu.memory_space<vmem>>) attributes {dimension_semantics = [#tpu.dimension_semantics<parallel>, #tpu.dimension_semantics<parallel>], iteration_bounds = array<i64: 8, 1>, scalar_prefetch = 0 : i64, scratch_operands = 0 : i64, tpu.core_type = #tpu.core_type<tc>, window_params = [{transform_indices = @transform_0, window_bounds = array<i64: 1, 6, 24, 128>}, {transform_indices = @transform_1, window_bounds = array<i64: 3, 3, 128, 128>}, {transform_indices = @transform_2, window_bounds = array<i64: 1, 128>}, {transform_indices = @transform_3, window_bounds = array<i64: 1, 64, 128>}]} {
    %cst = arith.constant 0.000000e+00 : f32
    %0 = vector.broadcast %cst : f32 to vector<64x128xf32>
    %c0 = arith.constant 0 : index
    %c0_0 = arith.constant 0 : index
    %c0_1 = arith.constant 0 : index
    %c0_2 = arith.constant 0 : index
    %1 = vector.load %arg2[%c0, %c0_0, %c0_1, %c0_2] : memref<1x6x24x128xbf16, #tpu.memory_space<vmem>>, vector<1x4x16x128xbf16>
    %2 = vector.shape_cast %1 : vector<1x4x16x128xbf16> to vector<4x16x128xbf16>
    %3 = vector.shape_cast %2 : vector<4x16x128xbf16> to vector<64x128xbf16>
    %c0_3 = arith.constant 0 : index
    %c0_4 = arith.constant 0 : index
    %c0_5 = arith.constant 0 : index
    %c0_6 = arith.constant 0 : index
    %4 = vector.load %arg3[%c0_3, %c0_4, %c0_5, %c0_6] : memref<3x3x128x128xbf16, #tpu.memory_space<vmem>>, vector<1x1x128x128xbf16>
    %5 = vector.shape_cast %4 : vector<1x1x128x128xbf16> to vector<128x128xbf16>
    %cst_7 = arith.constant dense<0.000000e+00> : vector<64x128xf32>
    %6 = tpu.matmul %3, %5, %cst_7 {dimension_numbers = #tpu.dot_dimension_numbers<[1], [0], [0], [1], [0, 0, 1, 1], [], []>} : vector<64x128xbf16>, vector<128x128xbf16>, vector<64x128xf32> -> vector<64x128xf32>
    %7 = arith.addf %0, %6 : vector<64x128xf32>
    %c0_8 = arith.constant 0 : index
    %c0_9 = arith.constant 0 : index
    %c1 = arith.constant 1 : index
    %c0_10 = arith.constant 0 : index
    %8 = vector.load %arg2[%c0_8, %c0_9, %c1, %c0_10] : memref<1x6x24x128xbf16, #tpu.memory_space<vmem>>, vector<1x4x16x128xbf16>
    %9 = vector.shape_cast %8 : vector<1x4x16x128xbf16> to vector<4x16x128xbf16>
    %10 = vector.shape_cast %9 : vector<4x16x128xbf16> to vector<64x128xbf16>
    %c0_11 = arith.constant 0 : index
    %c1_12 = arith.constant 1 : index
    %c0_13 = arith.constant 0 : index
    %c0_14 = arith.constant 0 : index
    %11 = vector.load %arg3[%c0_11, %c1_12, %c0_13, %c0_14] : memref<3x3x128x128xbf16, #tpu.memory_space<vmem>>, vector<1x1x128x128xbf16>
    %12 = vector.shape_cast %11 : vector<1x1x128x128xbf16> to vector<128x128xbf16>
    %cst_15 = arith.constant dense<0.000000e+00> : vector<64x128xf32>
    %13 = tpu.matmul %10, %12, %cst_15 {dimension_numbers = #tpu.dot_dimension_numbers<[1], [0], [0], [1], [0, 0, 1, 1], [], []>} : vector<64x128xbf16>, vector<128x128xbf16>, vector<64x128xf32> -> vector<64x128xf32>
    %14 = arith.addf %7, %13 : vector<64x128xf32>
    %c0_16 = arith.constant 0 : index
    %c0_17 = arith.constant 0 : index
    %c2 = arith.constant 2 : index
    %c0_18 = arith.constant 0 : index
    %15 = vector.load %arg2[%c0_16, %c0_17, %c2, %c0_18] : memref<1x6x24x128xbf16, #tpu.memory_space<vmem>>, vector<1x4x16x128xbf16>
    %16 = vector.shape_cast %15 : vector<1x4x16x128xbf16> to vector<4x16x128xbf16>
    %17 = vector.shape_cast %16 : vector<4x16x128xbf16> to vector<64x128xbf16>
    %c0_19 = arith.constant 0 : index
    %c2_20 = arith.constant 2 : index
    %c0_21 = arith.constant 0 : index
    %c0_22 = arith.constant 0 : index
    %18 = vector.load %arg3[%c0_19, %c2_20, %c0_21, %c0_22] : memref<3x3x128x128xbf16, #tpu.memory_space<vmem>>, vector<1x1x128x128xbf16>
    %19 = vector.shape_cast %18 : vector<1x1x128x128xbf16> to vector<128x128xbf16>
    %cst_23 = arith.constant dense<0.000000e+00> : vector<64x128xf32>
    %20 = tpu.matmul %17, %19, %cst_23 {dimension_numbers = #tpu.dot_dimension_numbers<[1], [0], [0], [1], [0, 0, 1, 1], [], []>} : vector<64x128xbf16>, vector<128x128xbf16>, vector<64x128xf32> -> vector<64x128xf32>
    %21 = arith.addf %14, %20 : vector<64x128xf32>
    %c0_24 = arith.constant 0 : index
    %c1_25 = arith.constant 1 : index
    %c0_26 = arith.constant 0 : index
    %c0_27 = arith.constant 0 : index
    %22 = vector.load %arg2[%c0_24, %c1_25, %c0_26, %c0_27] : memref<1x6x24x128xbf16, #tpu.memory_space<vmem>>, vector<1x4x16x128xbf16>
    %23 = vector.shape_cast %22 : vector<1x4x16x128xbf16> to vector<4x16x128xbf16>
    %24 = vector.shape_cast %23 : vector<4x16x128xbf16> to vector<64x128xbf16>
    %c1_28 = arith.constant 1 : index
    %c0_29 = arith.constant 0 : index
    %c0_30 = arith.constant 0 : index
    %c0_31 = arith.constant 0 : index
    %25 = vector.load %arg3[%c1_28, %c0_29, %c0_30, %c0_31] : memref<3x3x128x128xbf16, #tpu.memory_space<vmem>>, vector<1x1x128x128xbf16>
    %26 = vector.shape_cast %25 : vector<1x1x128x128xbf16> to vector<128x128xbf16>
    %cst_32 = arith.constant dense<0.000000e+00> : vector<64x128xf32>
    %27 = tpu.matmul %24, %26, %cst_32 {dimension_numbers = #tpu.dot_dimension_numbers<[1], [0], [0], [1], [0, 0, 1, 1], [], []>} : vector<64x128xbf16>, vector<128x128xbf16>, vector<64x128xf32> -> vector<64x128xf32>
    %28 = arith.addf %21, %27 : vector<64x128xf32>
    %c0_33 = arith.constant 0 : index
    %c1_34 = arith.constant 1 : index
    %c1_35 = arith.constant 1 : index
    %c0_36 = arith.constant 0 : index
    %29 = vector.load %arg2[%c0_33, %c1_34, %c1_35, %c0_36] : memref<1x6x24x128xbf16, #tpu.memory_space<vmem>>, vector<1x4x16x128xbf16>
    %30 = vector.shape_cast %29 : vector<1x4x16x128xbf16> to vector<4x16x128xbf16>
    %31 = vector.shape_cast %30 : vector<4x16x128xbf16> to vector<64x128xbf16>
    %c1_37 = arith.constant 1 : index
    %c1_38 = arith.constant 1 : index
    %c0_39 = arith.constant 0 : index
    %c0_40 = arith.constant 0 : index
    %32 = vector.load %arg3[%c1_37, %c1_38, %c0_39, %c0_40] : memref<3x3x128x128xbf16, #tpu.memory_space<vmem>>, vector<1x1x128x128xbf16>
    %33 = vector.shape_cast %32 : vector<1x1x128x128xbf16> to vector<128x128xbf16>
    %cst_41 = arith.constant dense<0.000000e+00> : vector<64x128xf32>
    %34 = tpu.matmul %31, %33, %cst_41 {dimension_numbers = #tpu.dot_dimension_numbers<[1], [0], [0], [1], [0, 0, 1, 1], [], []>} : vector<64x128xbf16>, vector<128x128xbf16>, vector<64x128xf32> -> vector<64x128xf32>
    %35 = arith.addf %28, %34 : vector<64x128xf32>
    %c0_42 = arith.constant 0 : index
    %c1_43 = arith.constant 1 : index
    %c2_44 = arith.constant 2 : index
    %c0_45 = arith.constant 0 : index
    %36 = vector.load %arg2[%c0_42, %c1_43, %c2_44, %c0_45] : memref<1x6x24x128xbf16, #tpu.memory_space<vmem>>, vector<1x4x16x128xbf16>
    %37 = vector.shape_cast %36 : vector<1x4x16x128xbf16> to vector<4x16x128xbf16>
    %38 = vector.shape_cast %37 : vector<4x16x128xbf16> to vector<64x128xbf16>
    %c1_46 = arith.constant 1 : index
    %c2_47 = arith.constant 2 : index
    %c0_48 = arith.constant 0 : index
    %c0_49 = arith.constant 0 : index
    %39 = vector.load %arg3[%c1_46, %c2_47, %c0_48, %c0_49] : memref<3x3x128x128xbf16, #tpu.memory_space<vmem>>, vector<1x1x128x128xbf16>
    %40 = vector.shape_cast %39 : vector<1x1x128x128xbf16> to vector<128x128xbf16>
    %cst_50 = arith.constant dense<0.000000e+00> : vector<64x128xf32>
    %41 = tpu.matmul %38, %40, %cst_50 {dimension_numbers = #tpu.dot_dimension_numbers<[1], [0], [0], [1], [0, 0, 1, 1], [], []>} : vector<64x128xbf16>, vector<128x128xbf16>, vector<64x128xf32> -> vector<64x128xf32>
    %42 = arith.addf %35, %41 : vector<64x128xf32>
    %c0_51 = arith.constant 0 : index
    %c2_52 = arith.constant 2 : index
    %c0_53 = arith.constant 0 : index
    %c0_54 = arith.constant 0 : index
    %43 = vector.load %arg2[%c0_51, %c2_52, %c0_53, %c0_54] : memref<1x6x24x128xbf16, #tpu.memory_space<vmem>>, vector<1x4x16x128xbf16>
    %44 = vector.shape_cast %43 : vector<1x4x16x128xbf16> to vector<4x16x128xbf16>
    %45 = vector.shape_cast %44 : vector<4x16x128xbf16> to vector<64x128xbf16>
    %c2_55 = arith.constant 2 : index
    %c0_56 = arith.constant 0 : index
    %c0_57 = arith.constant 0 : index
    %c0_58 = arith.constant 0 : index
    %46 = vector.load %arg3[%c2_55, %c0_56, %c0_57, %c0_58] : memref<3x3x128x128xbf16, #tpu.memory_space<vmem>>, vector<1x1x128x128xbf16>
    %47 = vector.shape_cast %46 : vector<1x1x128x128xbf16> to vector<128x128xbf16>
    %cst_59 = arith.constant dense<0.000000e+00> : vector<64x128xf32>
    %48 = tpu.matmul %45, %47, %cst_59 {dimension_numbers = #tpu.dot_dimension_numbers<[1], [0], [0], [1], [0, 0, 1, 1], [], []>} : vector<64x128xbf16>, vector<128x128xbf16>, vector<64x128xf32> -> vector<64x128xf32>
    %49 = arith.addf %42, %48 : vector<64x128xf32>
    %c0_60 = arith.constant 0 : index
    %c2_61 = arith.constant 2 : index
    %c1_62 = arith.constant 1 : index
    %c0_63 = arith.constant 0 : index
    %50 = vector.load %arg2[%c0_60, %c2_61, %c1_62, %c0_63] : memref<1x6x24x128xbf16, #tpu.memory_space<vmem>>, vector<1x4x16x128xbf16>
    %51 = vector.shape_cast %50 : vector<1x4x16x128xbf16> to vector<4x16x128xbf16>
    %52 = vector.shape_cast %51 : vector<4x16x128xbf16> to vector<64x128xbf16>
    %c2_64 = arith.constant 2 : index
    %c1_65 = arith.constant 1 : index
    %c0_66 = arith.constant 0 : index
    %c0_67 = arith.constant 0 : index
    %53 = vector.load %arg3[%c2_64, %c1_65, %c0_66, %c0_67] : memref<3x3x128x128xbf16, #tpu.memory_space<vmem>>, vector<1x1x128x128xbf16>
    %54 = vector.shape_cast %53 : vector<1x1x128x128xbf16> to vector<128x128xbf16>
    %cst_68 = arith.constant dense<0.000000e+00> : vector<64x128xf32>
    %55 = tpu.matmul %52, %54, %cst_68 {dimension_numbers = #tpu.dot_dimension_numbers<[1], [0], [0], [1], [0, 0, 1, 1], [], []>} : vector<64x128xbf16>, vector<128x128xbf16>, vector<64x128xf32> -> vector<64x128xf32>
    %56 = arith.addf %49, %55 : vector<64x128xf32>
    %c0_69 = arith.constant 0 : index
    %c2_70 = arith.constant 2 : index
    %c2_71 = arith.constant 2 : index
    %c0_72 = arith.constant 0 : index
    %57 = vector.load %arg2[%c0_69, %c2_70, %c2_71, %c0_72] : memref<1x6x24x128xbf16, #tpu.memory_space<vmem>>, vector<1x4x16x128xbf16>
    %58 = vector.shape_cast %57 : vector<1x4x16x128xbf16> to vector<4x16x128xbf16>
    %59 = vector.shape_cast %58 : vector<4x16x128xbf16> to vector<64x128xbf16>
    %c2_73 = arith.constant 2 : index
    %c2_74 = arith.constant 2 : index
    %c0_75 = arith.constant 0 : index
    %c0_76 = arith.constant 0 : index
    %60 = vector.load %arg3[%c2_73, %c2_74, %c0_75, %c0_76] : memref<3x3x128x128xbf16, #tpu.memory_space<vmem>>, vector<1x1x128x128xbf16>
    %61 = vector.shape_cast %60 : vector<1x1x128x128xbf16> to vector<128x128xbf16>
    %cst_77 = arith.constant dense<0.000000e+00> : vector<64x128xf32>
    %62 = tpu.matmul %59, %61, %cst_77 {dimension_numbers = #tpu.dot_dimension_numbers<[1], [0], [0], [1], [0, 0, 1, 1], [], []>} : vector<64x128xbf16>, vector<128x128xbf16>, vector<64x128xf32> -> vector<64x128xf32>
    %63 = arith.addf %56, %62 : vector<64x128xf32>
    %c0_78 = arith.constant 0 : index
    %c0_79 = arith.constant 0 : index
    %64 = vector.load %arg4[%c0_78, %c0_79] : memref<1x128xf32, #tpu.memory_space<vmem>>, vector<1x128xf32>
    %65 = vector.broadcast %64 : vector<1x128xf32> to vector<64x128xf32>
    %66 = arith.addf %63, %65 : vector<64x128xf32>
    %cst_80 = arith.constant 0.000000e+00 : f32
    %67 = vector.broadcast %cst_80 : f32 to vector<64x128xf32>
    %68 = arith.maximumf %66, %67 : vector<64x128xf32>
    %69 = arith.truncf %68 : vector<64x128xf32> to vector<64x128xbf16>
    %c0_81 = arith.constant 0 : index
    %c0_82 = arith.constant 0 : index
    %c0_83 = arith.constant 0 : index
    %70 = vector.load %arg5[%c0_81, %c0_82, %c0_83] : memref<1x64x128xbf16, #tpu.memory_space<vmem>>, vector<1x64x128xbf16>
    %71 = vector.shape_cast %70 : vector<1x64x128xbf16> to vector<64x128xbf16>
    %72 = vector.shape_cast %69 : vector<64x128xbf16> to vector<1x64x128xbf16>
    tpu.vector_store %arg5[%c0_81, %c0_82, %c0_83], %72 {strides = array<i32>} : memref<1x64x128xbf16, #tpu.memory_space<vmem>>, vector<1x64x128xbf16>,
    return
  }
  func.func @transform_0(%arg0: i32, %arg1: i32) -> (i32, i32, i32, i32) {
    %c0_i32 = arith.constant 0 : i32
    %c0_i32_0 = arith.constant 0 : i32
    %c0_i32_1 = arith.constant 0 : i32
    %c0_i32_2 = arith.constant 0 : i32
    return %arg0, %c0_i32, %c0_i32_0, %c0_i32_1 : i32, i32, i32, i32
  }
  func.func @transform_1(%arg0: i32, %arg1: i32) -> (i32, i32, i32, i32) {
    %c0_i32 = arith.constant 0 : i32
    %c0_i32_0 = arith.constant 0 : i32
    %c0_i32_1 = arith.constant 0 : i32
    %c0_i32_2 = arith.constant 0 : i32
    return %c0_i32, %c0_i32_0, %c0_i32_1, %arg1 : i32, i32, i32, i32
  }
  func.func @transform_2(%arg0: i32, %arg1: i32) -> (i32, i32) {
    %c0_i32 = arith.constant 0 : i32
    %c0_i32_0 = arith.constant 0 : i32
    return %c0_i32, %arg1 : i32, i32
  }
  func.func @transform_3(%arg0: i32, %arg1: i32) -> (i32, i32, i32) {
    %c0_i32 = arith.constant 0 : i32
    %c0_i32_0 = arith.constant 0 : i32
    return %arg0, %c0_i32, %arg1 : i32, i32, i32
  }
}

</mosaic_0001>

<llo_original>
// kernel: conv_block_forward.2
$region0: #{conv_block_forward.2}
  #allocation0 [shape = 'u32[]', space=smem, size = 0x4, offset = 0x4, fixed_abs, tag = 'smem constant byte address 0x4 - core index']
  #allocation1 [shape = 'u32[144,128]{1,0:T(1,128)}', space=vmem, size = 0x12000, scoped, tag = 'internal scratch']
  %s0 = inlined_call_operand.vmem [shape: bf16[8,6,24,128], index: 0, kind: input, shape index: {}]
  %s1 = inlined_call_operand.vmem [shape: bf16[3,3,128,128], index: 1, kind: input, shape index: {}]
  %s2 = inlined_call_operand.vmem [shape: f32[1,128], index: 2, kind: input, shape index: {}]
  %s3 = inlined_call_operand.vmem [shape: bf16[8,64,128], index: 3, kind: output, shape index: {}]
  %s4 = sld [smem:[#allocation0]]
  $region45: #{conv_block_forward.2} parent=0
    _
  %s6 = ssub.s32 1, %s4
  %s7 = scalar_select 0, %s6, %s4
  loop: start=0, step=1, limit=10
  $region2: #{conv_block_forward.2} parent=0 // loop_pre_header
    _
  $region3: #{conv_block_forward.2} parent=0 // loop_header
    %s9 = sphi 0, %s13
    %p10 = scmp.ge.s32.totalorder %s9, 10
    %s16 = sphi 0, %s28
    %s17 = sphi 0, %s24
    %s18 = sphi 0, %s16
    %s19 = sphi 0, %s17
    %s20 = sphi 0, %s18
    %s21 = sphi 0, %s19
    %s31 = sphi 0, %s33
    %s34 = sphi 0, %s31
    %s35 = sphi 0, %s34
    %s51 = sphi 0, %s35
    %s57 = sphi 0, %s59
    %s60 = sphi 0, %s57
    %s61 = sphi 0, %s60
    %s77 = sphi 0, %s61
    %s83 = sphi 0, %s85
    %s86 = sphi 0, %s83
    %s87 = sphi 0, %s86
    %s103 = sphi 0, %s87
    %s111 = sphi 0, %s113
    %s114 = sphi 0, %s111
    %s115 = sphi 0, %s114
    %s131 = sphi 0, %s115
  $region4: #{conv_block_forward.2} parent=0 // loop_header_branch
    %12 = sbr.rel (%p10) target = $region8
  $region5: #{conv_block_forward.2} parent=0 // loop_body
    %s14 = ssub.s32 %s9, 1
    %s15 = ssub.s32 %s9, 2
    %s22 = sadd.s32 1, %s17
    %p23 = scmp.ge.s32.totalorder %s22, 1
    %s24 = scalar_select %p23, 0, %s22
    %s25 = sadd.s32 1, %s16
    %s26 = scalar_select %p23, %s25, %s16
    %p27 = scmp.ge.s32.totalorder %s26, 8
    %s28 = scalar_select %p27, 0, %s26
    %s29 = ssub.s32 %s16, %s28
    %p30 = scmp.eq.s32.totalorder %s29, 0
    %s32 = sadd.s32 %s31, 1
    %s33 = scalar_select %p30, %s31, %s32
    %p36 = pneg %p30
    %p37 = scmp.eq.s32.totalorder %s9, 7
    %p38 = por %p36, %p37
    %p39 = scmp.ne.s32.totalorder %s31, %s34
    %p40 = scmp.eq.s32.totalorder %s9, 0
    %p41 = por %p39, %p40
    %p42 = scmp.ne.s32.totalorder %s31, %s34
    %p43 = scmp.eq.s32.totalorder %s14, 7
    %p44 = por %p42, %p43
    %p45 = scmp.ne.s32.totalorder %s34, %s35
    %p46 = scmp.eq.s32.totalorder %s14, 0
    %p47 = por %p45, %p46
    %p48 = scmp.ne.s32.totalorder %s34, %s35
    %p49 = scmp.eq.s32.totalorder %s15, 7
    %p50 = por %p48, %p49
    %p52 = scmp.ne.s32.totalorder %s35, %s51
    %p53 = scmp.eq.s32.totalorder %s15, 0
    %p54 = por %p52, %p53
    %s55 = ssub.s32 %s17, %s24
    %p56 = scmp.eq.s32.totalorder %s55, 0
    %s58 = sadd.s32 %s57, 1
    %s59 = scalar_select %p56, %s57, %s58
    %p62 = pneg %p56
    %p63 = scmp.eq.s32.totalorder %s9, 7
    %p64 = por %p62, %p63
    %p65 = scmp.ne.s32.totalorder %s57, %s60
    %p66 = scmp.eq.s32.totalorder %s9, 0
    %p67 = por %p65, %p66
    %p68 = scmp.ne.s32.totalorder %s57, %s60
    %p69 = scmp.eq.s32.totalorder %s14, 7
    %p70 = por %p68, %p69
    %p71 = scmp.ne.s32.totalorder %s60, %s61
    %p72 = scmp.eq.s32.totalorder %s14, 0
    %p73 = por %p71, %p72
    %p74 = scmp.ne.s32.totalorder %s60, %s61
    %p75 = scmp.eq.s32.totalorder %s15, 7
    %p76 = por %p74, %p75
    %p78 = scmp.ne.s32.totalorder %s61, %s77
    %p79 = scmp.eq.s32.totalorder %s15, 0
    %p80 = por %p78, %p79
    %s81 = ssub.s32 %s17, %s24
    %p82 = scmp.eq.s32.totalorder %s81, 0
    %s84 = sadd.s32 %s83, 1
    %s85 = scalar_select %p82, %s83, %s84
    %p88 = pneg %p82
    %p89 = scmp.eq.s32.totalorder %s9, 7
    %p90 = por %p88, %p89
    %p91 = scmp.ne.s32.totalorder %s83, %s86
    %p92 = scmp.eq.s32.totalorder %s9, 0
    %p93 = por %p91, %p92
    %p94 = scmp.ne.s32.totalorder %s83, %s86
    %p95 = scmp.eq.s32.totalorder %s14, 7
    %p96 = por %p94, %p95
    %p97 = scmp.ne.s32.totalorder %s86, %s87
    %p98 = scmp.eq.s32.totalorder %s14, 0
    %p99 = por %p97, %p98
    %p100 = scmp.ne.s32.totalorder %s86, %s87
    %p101 = scmp.eq.s32.totalorder %s15, 7
    %p102 = por %p100, %p101
    %p104 = scmp.ne.s32.totalorder %s87, %s103
    %p105 = scmp.eq.s32.totalorder %s15, 0
    %p106 = por %p104, %p105
    %s107 = ssub.s32 %s16, %s28
    %s108 = ssub.s32 %s17, %s24
    %s109 = sor.u32 %s107, %s108
    %p110 = scmp.eq.s32.totalorder %s109, 0
    %s112 = sadd.s32 %s111, 1
    %s113 = scalar_select %p110, %s111, %s112
    %p116 = pneg %p110
    %p117 = scmp.eq.s32.totalorder %s9, 7
    %p118 = por %p116, %p117
    %p119 = scmp.ne.s32.totalorder %s111, %s114
    %p120 = scmp.eq.s32.totalorder %s9, 0
    %p121 = por %p119, %p120
    %p122 = scmp.ne.s32.totalorder %s111, %s114
    %p123 = scmp.eq.s32.totalorder %s14, 7
    %p124 = por %p122, %p123
    %p125 = scmp.ne.s32.totalorder %s114, %s115
    %p126 = scmp.eq.s32.totalorder %s14, 0
    %p127 = por %p125, %p126
    %p128 = scmp.ne.s32.totalorder %s114, %s115
    %p129 = scmp.eq.s32.totalorder %s15, 7
    %p130 = por %p128, %p129
    %p132 = scmp.ne.s32.totalorder %s115, %s131
    %p133 = scmp.eq.s32.totalorder %s15, 0
    %p134 = por %p132, %p133
    %p135 = scmp.le.s32.totalorder 1, %s9
    %p136 = scmp.lt.s32.totalorder %s9, 9
    %p137 = pnand %p135, %p136
    %p138 = pneg %p137
    // Predicated region
    $region9: #{conv_block_forward.2} parent=5 // pred_check
      _
    $region10: #{conv_block_forward.2} parent=5 // pred_check_branch
      %140 = sbr.rel (%p137) target = $region12
    $region11: #{conv_block_forward.2} parent=5 // pred_region
      %s141 = ssub.s32 %s9, 1
      // Predicated region
      $region13: #{conv_block_forward.2} parent=11 // pred_check
        %p142 = pneg %p73
      $region14: #{conv_block_forward.2} parent=11 // pred_check_branch
        %144 = sbr.rel (%p142) target = $region16
      $region15: #{conv_block_forward.2} parent=11 // pred_region
        %p145 = scmp.lt.s32.totalorder %s19, 0
        %s146 = scalar_select %p145, %s19, 0
        %s147 = smul.addr %s146, 4
        %s148 = scalar_lea.vmem %s1, %s147
      $region16: #{conv_block_forward.2} parent=11 // pred_fallthru
        _
      // Predicated region
      $region17: #{conv_block_forward.2} parent=11 // pred_check
        %p149 = pneg %p99
      $region18: #{conv_block_forward.2} parent=11 // pred_check_branch
        %151 = sbr.rel (%p149) target = $region20
      $region19: #{conv_block_forward.2} parent=11 // pred_region
        %p152 = scmp.lt.s32.totalorder %s19, 0
        %s153 = scalar_select %p152, %s19, 0
        %s154 = scalar_lea.vmem %s2, %s153
      $region20: #{conv_block_forward.2} parent=11 // pred_fallthru
        _
    $region12: #{conv_block_forward.2} parent=5 // pred_fallthru
      _
    %p155 = scmp.lt.s32.totalorder %s9, 8
    // Predicated region
    $region21: #{conv_block_forward.2} parent=5 // pred_check
      %p156 = pneg %p155
    $region22: #{conv_block_forward.2} parent=5 // pred_check_branch
      %158 = sbr.rel (%p156) target = $region24
    $region23: #{conv_block_forward.2} parent=5 // pred_region
      // Predicated region
      $region25: #{conv_block_forward.2} parent=23 // pred_check
        %p159 = pneg %p41
      $region26: #{conv_block_forward.2} parent=23 // pred_check_branch
        %161 = sbr.rel (%p159) target = $region28
      $region27: #{conv_block_forward.2} parent=23 // pred_region
        %p162 = scmp.lt.s32.totalorder %s16, 7
        %s163 = scalar_select %p162, %s16, 7
        %s164 = smul.addr %s163, 18
        %s165 = smul.addr %s164, 4
        %s166 = scalar_lea.vmem %s0, %s165
      $region28: #{conv_block_forward.2} parent=23 // pred_fallthru
        _
    $region24: #{conv_block_forward.2} parent=5 // pred_fallthru
      _
    %p167 = scmp.le.s32.totalorder 1, %s9
    %p168 = scmp.lt.s32.totalorder %s9, 9
    %p169 = pnand %p167, %p168
    %p170 = pneg %p169
    // Predicated region
    $region29: #{conv_block_forward.2} parent=5 // pred_check
      _
    $region30: #{conv_block_forward.2} parent=5 // pred_check_branch
      %172 = sbr.rel (%p169) target = $region32
    $region31: #{conv_block_forward.2} parent=5 // pred_region
      %s173 = ssub.s32 %s9, 1
      %p174 = scmp.lt.s32.totalorder %s18, 7
      %s175 = scalar_select %p174, %s18, 7
      %s176 = smul.addr %s175, 18
      %s177 = smul.addr %s176, 4
      %s178 = scalar_lea.vmem %s0, %s177
      %p179 = pneg %p47
      %p180 = pneg %p44
      %p181 = scmp.lt.s32.totalorder %s19, 0
      %s182 = scalar_select %p181, %s19, 0
      %s183 = smul.addr %s182, 4
      %s184 = scalar_lea.vmem %s1, %s183
      %p185 = pneg %p73
      %p186 = pneg %p70
      %p187 = scmp.lt.s32.totalorder %s19, 0
      %s188 = scalar_select %p187, %s19, 0
      %s189 = scalar_lea.vmem %s2, %s188
      %p190 = pneg %p99
      %p191 = pneg %p96
      %p192 = pneg %p127
      %p193 = pneg %p124
      %p194 = scmp.lt.s32.totalorder %s18, 7
      %s195 = scalar_select %p194, %s18, 7
      %p196 = scmp.lt.s32.totalorder %s19, 0
      %s197 = scalar_select %p196, %s19, 0
      %s198 = smul.addr %s195, 8
      %s199 = sadd.s32 %s197, %s198
      %s200 = smul.addr %s199, 4
      %s201 = scalar_lea.vmem %s3, %s200
      %p202 = scmp.lt.s32.totalorder %s18, 7
      %s203 = scalar_select %p202, %s18, 7
      %s204 = smul.addr %s203, 18
      %s205 = smul.addr %s204, 4
      %s206 = scalar_lea.vmem %s0, %s205
      %p207 = scmp.lt.s32.totalorder %s19, 0
      %s208 = scalar_select %p207, %s19, 0
      %s209 = smul.addr %s208, 4
      %s210 = scalar_lea.vmem %s1, %s209
      %p211 = scmp.lt.s32.totalorder %s19, 0
      %s212 = scalar_select %p211, %s19, 0
      %s213 = scalar_lea.vmem %s2, %s212
      %p214 = scmp.lt.s32.totalorder %s18, 7
      %s215 = scalar_select %p214, %s18, 7
      %p216 = scmp.lt.s32.totalorder %s19, 0
      %s217 = scalar_select %p216, %s19, 0
      %s218 = smul.addr %s215, 8
      %s219 = sadd.s32 %s217, %s218
      %s220 = smul.addr %s219, 4
      %s221 = scalar_lea.vmem %s3, %s220
      %v223 = vld [vmem:[%s206] sm:$0xf]
      %v224 = vld [vmem:[%s206 + $0x4] sm:$0xf]
      %v225 = vld [vmem:[%s206 + $0xc] sm:$0xf]
      %v226 = vld [vmem:[%s206 + $0x10] sm:$0xf]
      %v227 = vld [vmem:[%s206 + $0x18] sm:$0xf]
      %v228 = vld [vmem:[%s206 + $0x1c] sm:$0xf]
      %v229 = vld [vmem:[%s206 + $0x24] sm:$0xf]
      %v230 = vld [vmem:[%s206 + $0x28] sm:$0xf]
      %v231 = vld [vmem:[%s210] sm:$0xf]
      %v232 = vld [vmem:[%s210 + $0x4] sm:$0xf]
      %v233 = vld [vmem:[%s210 + $0x8] sm:$0xf]
      %v234 = vld [vmem:[%s210 + $0xc] sm:$0xf]
      %v235 = vld [vmem:[%s210 + $0x10] sm:$0xf]
      %v236 = vld [vmem:[%s210 + $0x14] sm:$0xf]
      %v237 = vld [vmem:[%s210 + $0x18] sm:$0xf]
      %v238 = vld [vmem:[%s210 + $0x1c] sm:$0xf]
      %v239 = vld [vmem:[%s210 + $0x20] sm:$0xf]
      %v240 = vld [vmem:[%s210 + $0x24] sm:$0xf]
      %v241 = vld [vmem:[%s210 + $0x28] sm:$0xf]
      %v242 = vld [vmem:[%s210 + $0x2c] sm:$0xf]
      %v243 = vld [vmem:[%s210 + $0x30] sm:$0xf]
      %v244 = vld [vmem:[%s210 + $0x34] sm:$0xf]
      %v245 = vld [vmem:[%s210 + $0x38] sm:$0xf]
      %v246 = vld [vmem:[%s210 + $0x3c] sm:$0xf]
      %v247 = vld [vmem:[%s206 + $0x8] sm:$0x1]
      %v248 = vld [vmem:[%s206 + $0x14] sm:$0x1]
      %v249 = vld [vmem:[%s206 + $0x20] sm:$0x1]
      %v250 = vld [vmem:[%s206 + $0x2c] sm:$0x1]
      %vm251 = vsmask.f32 3328
      %vm252 = vsmask.f32 7440
      %vm253 = vmor %vm251, %vm252
      %v255 = vshrl.u32 %v223, 16
      %v257 = vrot.slane %v255, 4
      %v258 = vshll.u32 %v223, 16
      %v260 = vrot.slane %v258, 5
      %v261 = vor.u32 %v257, %v260
      %v262 = vrot.slane %v261, 4
      %v264 = vshll.u32 %v224, 16
      %v266 = vrot.slane %v264, 5
      %v267 = vsel %vm253, %v262, %v266
      %v268 = vshrl.u32 %v224, 16
      %v270 = vrot.slane %v268, 4
      %v271 = vor.u32 %v270, %v266
      %v272 = vrot.slane %v271, 4
      %v274 = vshll.u32 %v247, 16
      %v276 = vrot.slane %v274, 5
      %v277 = vsel %vm253, %v272, %v276
      %v279 = vshrl.u32 %v225, 16
      %v281 = vrot.slane %v279, 4
      %v282 = vshll.u32 %v225, 16
      %v284 = vrot.slane %v282, 5
      %v285 = vor.u32 %v281, %v284
      %v286 = vrot.slane %v285, 4
      %v288 = vshll.u32 %v226, 16
      %v290 = vrot.slane %v288, 5
      %v291 = vsel %vm253, %v286, %v290
      %v292 = vshrl.u32 %v226, 16
      %v294 = vrot.slane %v292, 4
      %v295 = vor.u32 %v294, %v290
      %v296 = vrot.slane %v295, 4
      %v298 = vshll.u32 %v248, 16
      %v300 = vrot.slane %v298, 5
      %v301 = vsel %vm253, %v296, %v300
      %v303 = vshrl.u32 %v227, 16
      %v305 = vrot.slane %v303, 4
      %v306 = vshll.u32 %v227, 16
      %v308 = vrot.slane %v306, 5
      %v309 = vor.u32 %v305, %v308
      %v310 = vrot.slane %v309, 4
      %v312 = vshll.u32 %v228, 16
      %v314 = vrot.slane %v312, 5
      %v315 = vsel %vm253, %v310, %v314
      %v316 = vshrl.u32 %v228, 16
      %v318 = vrot.slane %v316, 4
      %v319 = vor.u32 %v318, %v314
      %v320 = vrot.slane %v319, 4
      %v322 = vshll.u32 %v249, 16
      %v324 = vrot.slane %v322, 5
      %v325 = vsel %vm253, %v320, %v324
      %v327 = vshrl.u32 %v229, 16
      %v329 = vrot.slane %v327, 4
      %v330 = vshll.u32 %v229, 16
      %v332 = vrot.slane %v330, 5
      %v333 = vor.u32 %v329, %v332
      %v334 = vrot.slane %v333, 4
      %v336 = vshll.u32 %v230, 16
      %v338 = vrot.slane %v336, 5
      %v339 = vsel %vm253, %v334, %v338
      %v340 = vshrl.u32 %v230, 16
      %v342 = vrot.slane %v340, 4
      %v343 = vor.u32 %v342, %v338
      %v344 = vrot.slane %v343, 4
      %v346 = vshll.u32 %v250, 16
      %v348 = vrot.slane %v346, 5
      %v349 = vsel %vm253, %v344, %v348
      %s350 = scalar_lea.vmem %s210, 64
      %v351 = vld [vmem:[%s350] sm:$0xf]
      %v352 = vld [vmem:[%s350 + $0x4] sm:$0xf]
      %v353 = vld [vmem:[%s350 + $0x8] sm:$0xf]
      %v354 = vld [vmem:[%s350 + $0xc] sm:$0xf]
      %v355 = vld [vmem:[%s350 + $0x10] sm:$0xf]
      %v356 = vld [vmem:[%s350 + $0x14] sm:$0xf]
      %v357 = vld [vmem:[%s350 + $0x18] sm:$0xf]
      %v358 = vld [vmem:[%s350 + $0x1c] sm:$0xf]
      %v359 = vld [vmem:[%s350 + $0x20] sm:$0xf]
      %v360 = vld [vmem:[%s350 + $0x24] sm:$0xf]
      %v361 = vld [vmem:[%s350 + $0x28] sm:$0xf]
      %v362 = vld [vmem:[%s350 + $0x2c] sm:$0xf]
      %v363 = vld [vmem:[%s350 + $0x30] sm:$0xf]
      %v364 = vld [vmem:[%s350 + $0x34] sm:$0xf]
      %v365 = vld [vmem:[%s350 + $0x38] sm:$0xf]
      %v366 = vld [vmem:[%s350 + $0x3c] sm:$0xf]
      %v367 = vunpack.c.l.b16 %v267
      %v368 = vunpack.c.l.b16 %v277
      %v369 = vunpack.c.l.b16 %v291
      %v370 = vunpack.c.l.b16 %v301
      %v371 = vunpack.c.l.b16 %v315
      %v372 = vunpack.c.l.b16 %v325
      %v373 = vunpack.c.l.b16 %v339
      %v374 = vunpack.c.l.b16 %v349
      %v375 = vpack.c.b16 %v368, %v367
      %v376 = vpack.c.b16 %v370, %v369
      %v377 = vpack.c.b16 %v372, %v371
      %v378 = vpack.c.b16 %v374, %v373
      %v399 = vunpack.c.l.b16 %v351
      %v400 = vunpack.c.l.b16 %v352
      %v401 = vunpack.c.l.b16 %v353
      %v402 = vunpack.c.l.b16 %v354
      %v403 = vunpack.c.l.b16 %v355
      %v404 = vunpack.c.l.b16 %v356
      %v405 = vunpack.c.l.b16 %v357
      %v406 = vunpack.c.l.b16 %v358
      %v407 = vunpack.c.l.b16 %v359
      %v408 = vunpack.c.l.b16 %v360
      %v409 = vunpack.c.l.b16 %v361
      %v410 = vunpack.c.l.b16 %v362
      %v411 = vunpack.c.l.b16 %v363
      %v412 = vunpack.c.l.b16 %v364
      %v413 = vunpack.c.l.b16 %v365
      %v414 = vunpack.c.l.b16 %v366
      %v415 = vpack.c.b16 %v400, %v399
      %v416 = vpack.c.b16 %v402, %v401
      %v417 = vpack.c.b16 %v404, %v403
      %v418 = vpack.c.b16 %v406, %v405
      %v419 = vpack.c.b16 %v408, %v407
      %v420 = vpack.c.b16 %v410, %v409
      %v421 = vpack.c.b16 %v412, %v411
      %v422 = vpack.c.b16 %v414, %v413
      %431 = vmatprep.subr.bf16.mxu0 0
      %432 = vmatpush1.bf16.msra.mxu0 %v422
      %433 = vmatprep.subr.bf16.mxu0 0
      %434 = vmatpush1.bf16.msra.mxu0 %v421
      %435 = vmatprep.subr.bf16.mxu0 0
      %436 = vmatpush1.bf16.msra.mxu0 %v420
      %437 = vmatprep.subr.bf16.mxu0 0
      %438 = vmatpush1.bf16.msra.mxu0 %v419
      %439 = vmatprep.subr.bf16.mxu0 0
      %440 = vmatpush1.bf16.msra.mxu0 %v418
      %441 = vmatprep.subr.bf16.mxu0 0
      %442 = vmatpush1.bf16.msra.mxu0 %v417
      %443 = vmatprep.subr.bf16.mxu0 0
      %444 = vmatpush1.bf16.msra.mxu0 %v416
      %445 = vmatprep.subr.bf16.mxu0 0
      %446 = vmatpush1.bf16.msra.mxu0 %v415
      %447 = vmatprep.subr.bf16.mxu0 0
      %448 = vmatpush2.bf16.msra.mxu0 0
      %449 = vmatprep.subr.bf16.mxu0 0
      %450 = vmatpush2.bf16.msra.mxu0 0
      %451 = vmatprep.subr.bf16.mxu0 0
      %452 = vmatpush2.bf16.msra.mxu0 0
      %453 = vmatprep.subr.bf16.mxu0 0
      %454 = vmatpush2.bf16.msra.mxu0 0
      %455 = vmatprep.subr.bf16.mxu0 0
      %456 = vmatpush2.bf16.msra.mxu0 0
      %457 = vmatprep.subr.bf16.mxu0 0
      %458 = vmatpush2.bf16.msra.mxu0 0
      %459 = vmatprep.subr.bf16.mxu0 0
      %460 = vmatpush2.bf16.msra.mxu0 0
      %461 = vmatprep.subr.bf16.mxu0 0
      %462 = vmatpush2.bf16.msra.mxu0 0
      %463 = vmatprep.mubr.bf16.mxu0 0
      %464 = vmatmul.mubr.bf16.gmra.mxu0 %v375
      %v465 = vpop.f32.mrf.mxu0
      %v466 = vadd.f32 0.0, %v465
      %v467 = vpop.f32.mrf.mxu0
      %v468 = vpop.f32.mrf.mxu0
      %v469 = vadd.f32 0.0, %v468
      %v470 = vpop.f32.mrf.mxu0
      %471 = vmatprep.mubr.bf16.mxu0 0
      %472 = vmatmul.mubr.bf16.gmra.mxu0 %v376
      %v473 = vpop.f32.mrf.mxu0
      %v474 = vadd.f32 0.0, %v473
      %v475 = vpop.f32.mrf.mxu0
      %v476 = vpop.f32.mrf.mxu0
      %v477 = vadd.f32 0.0, %v476
      %v478 = vpop.f32.mrf.mxu0
      %479 = vmatprep.mubr.bf16.mxu0 0
      %480 = vmatmul.mubr.bf16.gmra.mxu0 %v377
      %v481 = vpop.f32.mrf.mxu0
      %v482 = vadd.f32 0.0, %v481
      %v483 = vpop.f32.mrf.mxu0
      %v484 = vpop.f32.mrf.mxu0
      %v485 = vadd.f32 0.0, %v484
      %v486 = vpop.f32.mrf.mxu0
      %487 = vmatprep.mubr.bf16.mxu0 0
      %488 = vmatmul.mubr.bf16.gmra.mxu0 %v378
      %v489 = vpop.f32.mrf.mxu0
      %v490 = vadd.f32 0.0, %v489
      %v491 = vpop.f32.mrf.mxu0
      %v492 = vpop.f32.mrf.mxu0
      %v493 = vadd.f32 0.0, %v492
      %v494 = vpop.f32.mrf.mxu0
      %495 = vdwg.mxu0
      %v504 = vunpack.c.l.b16 %v223
      %v505 = vunpack.c.l.b16 %v224
      %v506 = vunpack.c.l.b16 %v225
      %v507 = vunpack.c.l.b16 %v226
      %v508 = vunpack.c.l.b16 %v227
      %v509 = vunpack.c.l.b16 %v228
      %v510 = vunpack.c.l.b16 %v229
      %v511 = vunpack.c.l.b16 %v230
      %v512 = vpack.c.b16 %v505, %v504
      %v513 = vpack.c.b16 %v507, %v506
      %v514 = vpack.c.b16 %v509, %v508
      %v515 = vpack.c.b16 %v511, %v510
      %v536 = vunpack.c.l.b16 %v231
      %v537 = vunpack.c.l.b16 %v232
      %v538 = vunpack.c.l.b16 %v233
      %v539 = vunpack.c.l.b16 %v234
      %v540 = vunpack.c.l.b16 %v235
      %v541 = vunpack.c.l.b16 %v236
      %v542 = vunpack.c.l.b16 %v237
      %v543 = vunpack.c.l.b16 %v238
      %v544 = vunpack.c.l.b16 %v239
      %v545 = vunpack.c.l.b16 %v240
      %v546 = vunpack.c.l.b16 %v241
      %v547 = vunpack.c.l.b16 %v242
      %v548 = vunpack.c.l.b16 %v243
      %v549 = vunpack.c.l.b16 %v244
      %v550 = vunpack.c.l.b16 %v245
      %v551 = vunpack.c.l.b16 %v246
      %v552 = vpack.c.b16 %v537, %v536
      %v553 = vpack.c.b16 %v539, %v538
      %v554 = vpack.c.b16 %v541, %v540
      %v555 = vpack.c.b16 %v543, %v542
      %v556 = vpack.c.b16 %v545, %v544
      %v557 = vpack.c.b16 %v547, %v546
      %v558 = vpack.c.b16 %v549, %v548
      %v559 = vpack.c.b16 %v551, %v550
      %568 = vmatprep.subr.bf16.mxu0 0
      %569 = vmatpush1.bf16.msra.mxu0 %v559
      %570 = vmatprep.subr.bf16.mxu0 0
      %571 = vmatpush1.bf16.msra.mxu0 %v558
      %572 = vmatprep.subr.bf16.mxu0 0
      %573 = vmatpush1.bf16.msra.mxu0 %v557
      %574 = vmatprep.subr.bf16.mxu0 0
      %575 = vmatpush1.bf16.msra.mxu0 %v556
      %576 = vmatprep.subr.bf16.mxu0 0
      %577 = vmatpush1.bf16.msra.mxu0 %v555
      %578 = vmatprep.subr.bf16.mxu0 0
      %579 = vmatpush1.bf16.msra.mxu0 %v554
      %580 = vmatprep.subr.bf16.mxu0 0
      %581 = vmatpush1.bf16.msra.mxu0 %v553
      %582 = vmatprep.subr.bf16.mxu0 0
      %583 = vmatpush1.bf16.msra.mxu0 %v552
      %584 = vmatprep.subr.bf16.mxu0 0
      %585 = vmatpush2.bf16.msra.mxu0 0
      %586 = vmatprep.subr.bf16.mxu0 0
      %587 = vmatpush2.bf16.msra.mxu0 0
      %588 = vmatprep.subr.bf16.mxu0 0
      %589 = vmatpush2.bf16.msra.mxu0 0
      %590 = vmatprep.subr.bf16.mxu0 0
      %591 = vmatpush2.bf16.msra.mxu0 0
      %592 = vmatprep.subr.bf16.mxu0 0
      %593 = vmatpush2.bf16.msra.mxu0 0
      %594 = vmatprep.subr.bf16.mxu0 0
      %595 = vmatpush2.bf16.msra.mxu0 0
      %596 = vmatprep.subr.bf16.mxu0 0
      %597 = vmatpush2.bf16.msra.mxu0 0
      %598 = vmatprep.subr.bf16.mxu0 0
      %599 = vmatpush2.bf16.msra.mxu0 0
      %600 = vmatprep.mubr.bf16.mxu0 0
      %601 = vmatmul.mubr.bf16.gmra.mxu0 %v512
      %v602 = vpop.f32.mrf.mxu0
      %v603 = vadd.f32 %v466, %v602
      %v604 = vpop.f32.mrf.mxu0
      %v605 = vpop.f32.mrf.mxu0
      %v606 = vadd.f32 %v469, %v605
      %v607 = vpop.f32.mrf.mxu0
      %608 = vmatprep.mubr.bf16.mxu0 0
      %609 = vmatmul.mubr.bf16.gmra.mxu0 %v513
      %v610 = vpop.f32.mrf.mxu0
      %v611 = vadd.f32 %v474, %v610
      %v612 = vpop.f32.mrf.mxu0
      %v613 = vpop.f32.mrf.mxu0
      %v614 = vadd.f32 %v477, %v613
      %v615 = vpop.f32.mrf.mxu0
      %616 = vmatprep.mubr.bf16.mxu0 0
      %617 = vmatmul.mubr.bf16.gmra.mxu0 %v514
      %v618 = vpop.f32.mrf.mxu0
      %v619 = vadd.f32 %v482, %v618
      %v620 = vpop.f32.mrf.mxu0
      %v621 = vpop.f32.mrf.mxu0
      %v622 = vadd.f32 %v485, %v621
      %v623 = vpop.f32.mrf.mxu0
      %624 = vmatprep.mubr.bf16.mxu0 0
      %625 = vmatmul.mubr.bf16.gmra.mxu0 %v515
      %v626 = vpop.f32.mrf.mxu0
      %v627 = vadd.f32 %v490, %v626
      %v628 = vpop.f32.mrf.mxu0
      %v629 = vpop.f32.mrf.mxu0
      %v630 = vadd.f32 %v493, %v629
      %v631 = vpop.f32.mrf.mxu0
      %632 = vdwg.mxu0
      %v633 = vld [vmem:[%s206] sm:$0xe]
      %v634 = vld [vmem:[%s206 + $0xc] sm:$0xe]
      %v635 = vld [vmem:[%s206 + $0x18] sm:$0xe]
      %v636 = vld [vmem:[%s206 + $0x24] sm:$0xe]
      %vm645 = vcmask 1042432
      %vm646 = vcmask 1046532
      %vm647 = vmor %vm645, %vm646
      %v648 = vrot.slane %v633, 5
      %v649 = vrot.slane %v648, 4
      %v650 = vrot.slane %v224, 5
      %v651 = vsel %vm647, %v649, %v650
      %v652 = vrot.slane %v650, 4
      %v653 = vrot.slane %v247, 5
      %v654 = vsel %vm647, %v652, %v653
      %v655 = vrot.slane %v634, 5
      %v656 = vrot.slane %v655, 4
      %v657 = vrot.slane %v226, 5
      %v658 = vsel %vm647, %v656, %v657
      %v659 = vrot.slane %v657, 4
      %v660 = vrot.slane %v248, 5
      %v661 = vsel %vm647, %v659, %v660
      %v662 = vrot.slane %v635, 5
      %v663 = vrot.slane %v662, 4
      %v664 = vrot.slane %v228, 5
      %v665 = vsel %vm647, %v663, %v664
      %v666 = vrot.slane %v664, 4
      %v667 = vrot.slane %v249, 5
      %v668 = vsel %vm647, %v666, %v667
      %v669 = vrot.slane %v636, 5
      %v670 = vrot.slane %v669, 4
      %v671 = vrot.slane %v230, 5
      %v672 = vsel %vm647, %v670, %v671
      %v673 = vrot.slane %v671, 4
      %v674 = vrot.slane %v250, 5
      %v675 = vsel %vm647, %v673, %v674
      %s676 = scalar_lea.vmem %s210, 128
      %v677 = vld [vmem:[%s676] sm:$0xf]
      %v678 = vld [vmem:[%s676 + $0x4] sm:$0xf]
      %v679 = vld [vmem:[%s676 + $0x8] sm:$0xf]
      %v680 = vld [vmem:[%s676 + $0xc] sm:$0xf]
      %v681 = vld [vmem:[%s676 + $0x10] sm:$0xf]
      %v682 = vld [vmem:[%s676 + $0x14] sm:$0xf]
      %v683 = vld [vmem:[%s676 + $0x18] sm:$0xf]
      %v684 = vld [vmem:[%s676 + $0x1c] sm:$0xf]
      %v685 = vld [vmem:[%s676 + $0x20] sm:$0xf]
      %v686 = vld [vmem:[%s676 + $0x24] sm:$0xf]
      %v687 = vld [vmem:[%s676 + $0x28] sm:$0xf]
      %v688 = vld [vmem:[%s676 + $0x2c] sm:$0xf]
      %v689 = vld [vmem:[%s676 + $0x30] sm:$0xf]
      %v690 = vld [vmem:[%s676 + $0x34] sm:$0xf]
      %v691 = vld [vmem:[%s676 + $0x38] sm:$0xf]
      %v692 = vld [vmem:[%s676 + $0x3c] sm:$0xf]
      %v693 = vunpack.c.l.b16 %v651
      %v694 = vunpack.c.l.b16 %v654
      %v695 = vunpack.c.l.b16 %v658
      %v696 = vunpack.c.l.b16 %v661
      %v697 = vunpack.c.l.b16 %v665
      %v698 = vunpack.c.l.b16 %v668
      %v699 = vunpack.c.l.b16 %v672
      %v700 = vunpack.c.l.b16 %v675
      %v701 = vpack.c.b16 %v694, %v693
      %v702 = vpack.c.b16 %v696, %v695
      %v703 = vpack.c.b16 %v698, %v697
      %v704 = vpack.c.b16 %v700, %v699
      %v725 = vunpack.c.l.b16 %v677
      %v726 = vunpack.c.l.b16 %v678
      %v727 = vunpack.c.l.b16 %v679
      %v728 = vunpack.c.l.b16 %v680
      %v729 = vunpack.c.l.b16 %v681
      %v730 = vunpack.c.l.b16 %v682
      %v731 = vunpack.c.l.b16 %v683
      %v732 = vunpack.c.l.b16 %v684
      %v733 = vunpack.c.l.b16 %v685
      %v734 = vunpack.c.l.b16 %v686
      %v735 = vunpack.c.l.b16 %v687
      %v736 = vunpack.c.l.b16 %v688
      %v737 = vunpack.c.l.b16 %v689
      %v738 = vunpack.c.l.b16 %v690
      %v739 = vunpack.c.l.b16 %v691
      %v740 = vunpack.c.l.b16 %v692
      %v741 = vpack.c.b16 %v726, %v725
      %v742 = vpack.c.b16 %v728, %v727
      %v743 = vpack.c.b16 %v730, %v729
      %v744 = vpack.c.b16 %v732, %v731
      %v745 = vpack.c.b16 %v734, %v733
      %v746 = vpack.c.b16 %v736, %v735
      %v747 = vpack.c.b16 %v738, %v737
      %v748 = vpack.c.b16 %v740, %v739
      %757 = vmatprep.subr.bf16.mxu0 0
      %758 = vmatpush1.bf16.msra.mxu0 %v748
      %759 = vmatprep.subr.bf16.mxu0 0
      %760 = vmatpush1.bf16.msra.mxu0 %v747
      %761 = vmatprep.subr.bf16.mxu0 0
      %762 = vmatpush1.bf16.msra.mxu0 %v746
      %763 = vmatprep.subr.bf16.mxu0 0
      %764 = vmatpush1.bf16.msra.mxu0 %v745
      %765 = vmatprep.subr.bf16.mxu0 0
      %766 = vmatpush1.bf16.msra.mxu0 %v744
      %767 = vmatprep.subr.bf16.mxu0 0
      %768 = vmatpush1.bf16.msra.mxu0 %v743
      %769 = vmatprep.subr.bf16.mxu0 0
      %770 = vmatpush1.bf16.msra.mxu0 %v742
      %771 = vmatprep.subr.bf16.mxu0 0
      %772 = vmatpush1.bf16.msra.mxu0 %v741
      %773 = vmatprep.subr.bf16.mxu0 0
      %774 = vmatpush2.bf16.msra.mxu0 0
      %775 = vmatprep.subr.bf16.mxu0 0
      %776 = vmatpush2.bf16.msra.mxu0 0
      %777 = vmatprep.subr.bf16.mxu0 0
      %778 = vmatpush2.bf16.msra.mxu0 0
      %779 = vmatprep.subr.bf16.mxu0 0
      %780 = vmatpush2.bf16.msra.mxu0 0
      %781 = vmatprep.subr.bf16.mxu0 0
      %782 = vmatpush2.bf16.msra.mxu0 0
      %783 = vmatprep.subr.bf16.mxu0 0
      %784 = vmatpush2.bf16.msra.mxu0 0
      %785 = vmatprep.subr.bf16.mxu0 0
      %786 = vmatpush2.bf16.msra.mxu0 0
      %787 = vmatprep.subr.bf16.mxu0 0
      %788 = vmatpush2.bf16.msra.mxu0 0
      %789 = vmatprep.mubr.bf16.mxu0 0
      %790 = vmatmul.mubr.bf16.gmra.mxu0 %v701
      %v791 = vpop.f32.mrf.mxu0
      %v792 = vadd.f32 0.0, %v791
      %v793 = vpop.f32.mrf.mxu0
      %v794 = vpop.f32.mrf.mxu0
      %v795 = vadd.f32 0.0, %v794
      %v796 = vpop.f32.mrf.mxu0
      %797 = vmatprep.mubr.bf16.mxu0 0
      %798 = vmatmul.mubr.bf16.gmra.mxu0 %v702
      %v799 = vpop.f32.mrf.mxu0
      %v800 = vadd.f32 0.0, %v799
      %v801 = vpop.f32.mrf.mxu0
      %v802 = vpop.f32.mrf.mxu0
      %v803 = vadd.f32 0.0, %v802
      %v804 = vpop.f32.mrf.mxu0
      %805 = vmatprep.mubr.bf16.mxu0 0
      %806 = vmatmul.mubr.bf16.gmra.mxu0 %v703
      %v807 = vpop.f32.mrf.mxu0
      %v808 = vadd.f32 0.0, %v807
      %v809 = vpop.f32.mrf.mxu0
      %v810 = vpop.f32.mrf.mxu0
      %v811 = vadd.f32 0.0, %v810
      %v812 = vpop.f32.mrf.mxu0
      %813 = vmatprep.mubr.bf16.mxu0 0
      %814 = vmatmul.mubr.bf16.gmra.mxu0 %v704
      %v815 = vpop.f32.mrf.mxu0
      %v816 = vadd.f32 0.0, %v815
      %v817 = vpop.f32.mrf.mxu0
      %v818 = vpop.f32.mrf.mxu0
      %v819 = vadd.f32 0.0, %v818
      %v820 = vpop.f32.mrf.mxu0
      %821 = vdwg.mxu0
      %v822 = vadd.f32 %v603, %v792
      %v823 = vadd.f32 %v606, %v795
      %v824 = vadd.f32 %v611, %v800
      %v825 = vadd.f32 %v614, %v803
      %v826 = vadd.f32 %v619, %v808
      %v827 = vadd.f32 %v622, %v811
      %v828 = vadd.f32 %v627, %v816
      %v829 = vadd.f32 %v630, %v819
      %s830 = scalar_lea.vmem %s206, 12
      %v831 = vld [vmem:[%s830] sm:$0xf]
      %v832 = vld [vmem:[%s830 + $0x4] sm:$0xf]
      %v833 = vld [vmem:[%s830 + $0xc] sm:$0xf]
      %v834 = vld [vmem:[%s830 + $0x10] sm:$0xf]
      %v835 = vld [vmem:[%s830 + $0x18] sm:$0xf]
      %v836 = vld [vmem:[%s830 + $0x1c] sm:$0xf]
      %v837 = vld [vmem:[%s830 + $0x24] sm:$0xf]
      %v838 = vld [vmem:[%s830 + $0x28] sm:$0xf]
      %s839 = scalar_lea.vmem %s210, 192
      %v840 = vld [vmem:[%s839] sm:$0xf]
      %v841 = vld [vmem:[%s839 + $0x4] sm:$0xf]
      %v842 = vld [vmem:[%s839 + $0x8] sm:$0xf]
      %v843 = vld [vmem:[%s839 + $0xc] sm:$0xf]
      %v844 = vld [vmem:[%s839 + $0x10] sm:$0xf]
      %v845 = vld [vmem:[%s839 + $0x14] sm:$0xf]
      %v846 = vld [vmem:[%s839 + $0x18] sm:$0xf]
      %v847 = vld [vmem:[%s839 + $0x1c] sm:$0xf]
      %v848 = vld [vmem:[%s839 + $0x20] sm:$0xf]
      %v849 = vld [vmem:[%s839 + $0x24] sm:$0xf]
      %v850 = vld [vmem:[%s839 + $0x28] sm:$0xf]
      %v851 = vld [vmem:[%s839 + $0x2c] sm:$0xf]
      %v852 = vld [vmem:[%s839 + $0x30] sm:$0xf]
      %v853 = vld [vmem:[%s839 + $0x34] sm:$0xf]
      %v854 = vld [vmem:[%s839 + $0x38] sm:$0xf]
      %v855 = vld [vmem:[%s839 + $0x3c] sm:$0xf]
      %v864 = vunpack.c.l.b16 %v831
      %v865 = vunpack.c.l.b16 %v832
      %v866 = vunpack.c.l.b16 %v833
      %v867 = vunpack.c.l.b16 %v834
      %v868 = vunpack.c.l.b16 %v835
      %v869 = vunpack.c.l.b16 %v836
      %v870 = vunpack.c.l.b16 %v837
      %v871 = vunpack.c.l.b16 %v838
      %v872 = vpack.c.b16 %v865, %v864
      %v873 = vpack.c.b16 %v867, %v866
      %v874 = vpack.c.b16 %v869, %v868
      %v875 = vpack.c.b16 %v871, %v870
      %v896 = vunpack.c.l.b16 %v840
      %v897 = vunpack.c.l.b16 %v841
      %v898 = vunpack.c.l.b16 %v842
      %v899 = vunpack.c.l.b16 %v843
      %v900 = vunpack.c.l.b16 %v844
      %v901 = vunpack.c.l.b16 %v845
      %v902 = vunpack.c.l.b16 %v846
      %v903 = vunpack.c.l.b16 %v847
      %v904 = vunpack.c.l.b16 %v848
      %v905 = vunpack.c.l.b16 %v849
      %v906 = vunpack.c.l.b16 %v850
      %v907 = vunpack.c.l.b16 %v851
      %v908 = vunpack.c.l.b16 %v852
      %v909 = vunpack.c.l.b16 %v853
      %v910 = vunpack.c.l.b16 %v854
      %v911 = vunpack.c.l.b16 %v855
      %v912 = vpack.c.b16 %v897, %v896
      %v913 = vpack.c.b16 %v899, %v898
      %v914 = vpack.c.b16 %v901, %v900
      %v915 = vpack.c.b16 %v903, %v902
      %v916 = vpack.c.b16 %v905, %v904
      %v917 = vpack.c.b16 %v907, %v906
      %v918 = vpack.c.b16 %v909, %v908
      %v919 = vpack.c.b16 %v911, %v910
      %928 = vmatprep.subr.bf16.mxu0 0
      %929 = vmatpush1.bf16.msra.mxu0 %v919
      %930 = vmatprep.subr.bf16.mxu0 0
      %931 = vmatpush1.bf16.msra.mxu0 %v918
      %932 = vmatprep.subr.bf16.mxu0 0
      %933 = vmatpush1.bf16.msra.mxu0 %v917
      %934 = vmatprep.subr.bf16.mxu0 0
      %935 = vmatpush1.bf16.msra.mxu0 %v916
      %936 = vmatprep.subr.bf16.mxu0 0
      %937 = vmatpush1.bf16.msra.mxu0 %v915
      %938 = vmatprep.subr.bf16.mxu0 0
      %939 = vmatpush1.bf16.msra.mxu0 %v914
      %940 = vmatprep.subr.bf16.mxu0 0
      %941 = vmatpush1.bf16.msra.mxu0 %v913
      %942 = vmatprep.subr.bf16.mxu0 0
      %943 = vmatpush1.bf16.msra.mxu0 %v912
      %944 = vmatprep.subr.bf16.mxu0 0
      %945 = vmatpush2.bf16.msra.mxu0 0
      %946 = vmatprep.subr.bf16.mxu0 0
      %947 = vmatpush2.bf16.msra.mxu0 0
      %948 = vmatprep.subr.bf16.mxu0 0
      %949 = vmatpush2.bf16.msra.mxu0 0
      %950 = vmatprep.subr.bf16.mxu0 0
      %951 = vmatpush2.bf16.msra.mxu0 0
      %952 = vmatprep.subr.bf16.mxu0 0
      %953 = vmatpush2.bf16.msra.mxu0 0
      %954 = vmatprep.subr.bf16.mxu0 0
      %955 = vmatpush2.bf16.msra.mxu0 0
      %956 = vmatprep.subr.bf16.mxu0 0
      %957 = vmatpush2.bf16.msra.mxu0 0
      %958 = vmatprep.subr.bf16.mxu0 0
      %959 = vmatpush2.bf16.msra.mxu0 0
      %960 = vmatprep.mubr.bf16.mxu0 0
      %961 = vmatmul.mubr.bf16.gmra.mxu0 %v872
      %v962 = vpop.f32.mrf.mxu0
      %v963 = vadd.f32 0.0, %v962
      %v964 = vpop.f32.mrf.mxu0
      %v965 = vpop.f32.mrf.mxu0
      %v966 = vadd.f32 0.0, %v965
      %v967 = vpop.f32.mrf.mxu0
      %968 = vmatprep.mubr.bf16.mxu0 0
      %969 = vmatmul.mubr.bf16.gmra.mxu0 %v873
      %v970 = vpop.f32.mrf.mxu0
      %v971 = vadd.f32 0.0, %v970
      %v972 = vpop.f32.mrf.mxu0
      %v973 = vpop.f32.mrf.mxu0
      %v974 = vadd.f32 0.0, %v973
      %v975 = vpop.f32.mrf.mxu0
      %976 = vmatprep.mubr.bf16.mxu0 0
      %977 = vmatmul.mubr.bf16.gmra.mxu0 %v874
      %v978 = vpop.f32.mrf.mxu0
      %v979 = vadd.f32 0.0, %v978
      %v980 = vpop.f32.mrf.mxu0
      %v981 = vpop.f32.mrf.mxu0
      %v982 = vadd.f32 0.0, %v981
      %v983 = vpop.f32.mrf.mxu0
      %984 = vmatprep.mubr.bf16.mxu0 0
      %985 = vmatmul.mubr.bf16.gmra.mxu0 %v875
      %v986 = vpop.f32.mrf.mxu0
      %v987 = vadd.f32 0.0, %v986
      %v988 = vpop.f32.mrf.mxu0
      %v989 = vpop.f32.mrf.mxu0
      %v990 = vadd.f32 0.0, %v989
      %v991 = vpop.f32.mrf.mxu0
      %992 = vdwg.mxu0
      %v993 = vadd.f32 %v822, %v963
      %v994 = vadd.f32 %v823, %v966
      %v995 = vadd.f32 %v824, %v971
      %v996 = vadd.f32 %v825, %v974
      %v997 = vadd.f32 %v826, %v979
      %v998 = vadd.f32 %v827, %v982
      %v999 = vadd.f32 %v828, %v987
      %v1000 = vadd.f32 %v829, %v990
      %v1001 = vld [vmem:[%s830] sm:$0xf]
      %v1002 = vld [vmem:[%s830 + $0x4] sm:$0xf]
      %v1003 = vld [vmem:[%s830 + $0x8] sm:$0x1]
      %v1004 = vld [vmem:[%s830 + $0xc] sm:$0xf]
      %v1005 = vld [vmem:[%s830 + $0x10] sm:$0xf]
      %v1006 = vld [vmem:[%s830 + $0x14] sm:$0x1]
      %v1007 = vld [vmem:[%s830 + $0x18] sm:$0xf]
      %v1008 = vld [vmem:[%s830 + $0x1c] sm:$0xf]
      %v1009 = vld [vmem:[%s830 + $0x20] sm:$0x1]
      %v1010 = vld [vmem:[%s830 + $0x24] sm:$0xf]
      %v1011 = vld [vmem:[%s830 + $0x28] sm:$0xf]
      %v1012 = vld [vmem:[%s830 + $0x2c] sm:$0x1]
      %v1014 = vshrl.u32 %v1001, 16
      %v1016 = vrot.slane %v1014, 4
      %v1017 = vshll.u32 %v1001, 16
      %v1019 = vrot.slane %v1017, 5
      %v1020 = vor.u32 %v1016, %v1019
      %v1021 = vrot.slane %v1020, 4
      %v1023 = vshll.u32 %v1002, 16
      %v1025 = vrot.slane %v1023, 5
      %v1026 = vsel %vm253, %v1021, %v1025
      %v1027 = vshrl.u32 %v1002, 16
      %v1029 = vrot.slane %v1027, 4
      %v1030 = vor.u32 %v1029, %v1025
      %v1031 = vrot.slane %v1030, 4
      %v1033 = vshll.u32 %v1003, 16
      %v1035 = vrot.slane %v1033, 5
      %v1036 = vsel %vm253, %v1031, %v1035
      %v1038 = vshrl.u32 %v1004, 16
      %v1040 = vrot.slane %v1038, 4
      %v1041 = vshll.u32 %v1004, 16
      %v1043 = vrot.slane %v1041, 5
      %v1044 = vor.u32 %v1040, %v1043
      %v1045 = vrot.slane %v1044, 4
      %v1047 = vshll.u32 %v1005, 16
      %v1049 = vrot.slane %v1047, 5
      %v1050 = vsel %vm253, %v1045, %v1049
      %v1051 = vshrl.u32 %v1005, 16
      %v1053 = vrot.slane %v1051, 4
      %v1054 = vor.u32 %v1053, %v1049
      %v1055 = vrot.slane %v1054, 4
      %v1057 = vshll.u32 %v1006, 16
      %v1059 = vrot.slane %v1057, 5
      %v1060 = vsel %vm253, %v1055, %v1059
      %v1062 = vshrl.u32 %v1007, 16
      %v1064 = vrot.slane %v1062, 4
      %v1065 = vshll.u32 %v1007, 16
      %v1067 = vrot.slane %v1065, 5
      %v1068 = vor.u32 %v1064, %v1067
      %v1069 = vrot.slane %v1068, 4
      %v1071 = vshll.u32 %v1008, 16
      %v1073 = vrot.slane %v1071, 5
      %v1074 = vsel %vm253, %v1069, %v1073
      %v1075 = vshrl.u32 %v1008, 16
      %v1077 = vrot.slane %v1075, 4
      %v1078 = vor.u32 %v1077, %v1073
      %v1079 = vrot.slane %v1078, 4
      %v1081 = vshll.u32 %v1009, 16
      %v1083 = vrot.slane %v1081, 5
      %v1084 = vsel %vm253, %v1079, %v1083
      %v1086 = vshrl.u32 %v1010, 16
      %v1088 = vrot.slane %v1086, 4
      %v1089 = vshll.u32 %v1010, 16
      %v1091 = vrot.slane %v1089, 5
      %v1092 = vor.u32 %v1088, %v1091
      %v1093 = vrot.slane %v1092, 4
      %v1095 = vshll.u32 %v1011, 16
      %v1097 = vrot.slane %v1095, 5
      %v1098 = vsel %vm253, %v1093, %v1097
      %v1099 = vshrl.u32 %v1011, 16
      %v1101 = vrot.slane %v1099, 4
      %v1102 = vor.u32 %v1101, %v1097
      %v1103 = vrot.slane %v1102, 4
      %v1105 = vshll.u32 %v1012, 16
      %v1107 = vrot.slane %v1105, 5
      %v1108 = vsel %vm253, %v1103, %v1107
      %s1109 = scalar_lea.vmem %s210, 256
      %v1110 = vld [vmem:[%s1109] sm:$0xf]
      %v1111 = vld [vmem:[%s1109 + $0x4] sm:$0xf]
      %v1112 = vld [vmem:[%s1109 + $0x8] sm:$0xf]
      %v1113 = vld [vmem:[%s1109 + $0xc] sm:$0xf]
      %v1114 = vld [vmem:[%s1109 + $0x10] sm:$0xf]
      %v1115 = vld [vmem:[%s1109 + $0x14] sm:$0xf]
      %v1116 = vld [vmem:[%s1109 + $0x18] sm:$0xf]
      %v1117 = vld [vmem:[%s1109 + $0x1c] sm:$0xf]
      %v1118 = vld [vmem:[%s1109 + $0x20] sm:$0xf]
      %v1119 = vld [vmem:[%s1109 + $0x24] sm:$0xf]
      %v1120 = vld [vmem:[%s1109 + $0x28] sm:$0xf]
      %v1121 = vld [vmem:[%s1109 + $0x2c] sm:$0xf]
      %v1122 = vld [vmem:[%s1109 + $0x30] sm:$0xf]
      %v1123 = vld [vmem:[%s1109 + $0x34] sm:$0xf]
      %v1124 = vld [vmem:[%s1109 + $0x38] sm:$0xf]
      %v1125 = vld [vmem:[%s1109 + $0x3c] sm:$0xf]
      %v1126 = vunpack.c.l.b16 %v1026
      %v1127 = vunpack.c.l.b16 %v1036
      %v1128 = vunpack.c.l.b16 %v1050
      %v1129 = vunpack.c.l.b16 %v1060
      %v1130 = vunpack.c.l.b16 %v1074
      %v1131 = vunpack.c.l.b16 %v1084
      %v1132 = vunpack.c.l.b16 %v1098
      %v1133 = vunpack.c.l.b16 %v1108
      %v1134 = vpack.c.b16 %v1127, %v1126
      %v1135 = vpack.c.b16 %v1129, %v1128
      %v1136 = vpack.c.b16 %v1131, %v1130
      %v1137 = vpack.c.b16 %v1133, %v1132
      %v1158 = vunpack.c.l.b16 %v1110
      %v1159 = vunpack.c.l.b16 %v1111
      %v1160 = vunpack.c.l.b16 %v1112
      %v1161 = vunpack.c.l.b16 %v1113
      %v1162 = vunpack.c.l.b16 %v1114
      %v1163 = vunpack.c.l.b16 %v1115
      %v1164 = vunpack.c.l.b16 %v1116
      %v1165 = vunpack.c.l.b16 %v1117
      %v1166 = vunpack.c.l.b16 %v1118
      %v1167 = vunpack.c.l.b16 %v1119
      %v1168 = vunpack.c.l.b16 %v1120
      %v1169 = vunpack.c.l.b16 %v1121
      %v1170 = vunpack.c.l.b16 %v1122
      %v1171 = vunpack.c.l.b16 %v1123
      %v1172 = vunpack.c.l.b16 %v1124
      %v1173 = vunpack.c.l.b16 %v1125
      %v1174 = vpack.c.b16 %v1159, %v1158
      %v1175 = vpack.c.b16 %v1161, %v1160
      %v1176 = vpack.c.b16 %v1163, %v1162
      %v1177 = vpack.c.b16 %v1165, %v1164
      %v1178 = vpack.c.b16 %v1167, %v1166
      %v1179 = vpack.c.b16 %v1169, %v1168
      %v1180 = vpack.c.b16 %v1171, %v1170
      %v1181 = vpack.c.b16 %v1173, %v1172
      %1190 = vmatprep.subr.bf16.mxu0 0
      %1191 = vmatpush1.bf16.msra.mxu0 %v1181
      %1192 = vmatprep.subr.bf16.mxu0 0
      %1193 = vmatpush1.bf16.msra.mxu0 %v1180
      %1194 = vmatprep.subr.bf16.mxu0 0
      %1195 = vmatpush1.bf16.msra.mxu0 %v1179
      %1196 = vmatprep.subr.bf16.mxu0 0
      %1197 = vmatpush1.bf16.msra.mxu0 %v1178
      %1198 = vmatprep.subr.bf16.mxu0 0
      %1199 = vmatpush1.bf16.msra.mxu0 %v1177
      %1200 = vmatprep.subr.bf16.mxu0 0
      %1201 = vmatpush1.bf16.msra.mxu0 %v1176
      %1202 = vmatprep.subr.bf16.mxu0 0
      %1203 = vmatpush1.bf16.msra.mxu0 %v1175
      %1204 = vmatprep.subr.bf16.mxu0 0
      %1205 = vmatpush1.bf16.msra.mxu0 %v1174
      %1206 = vmatprep.subr.bf16.mxu0 0
      %1207 = vmatpush2.bf16.msra.mxu0 0
      %1208 = vmatprep.subr.bf16.mxu0 0
      %1209 = vmatpush2.bf16.msra.mxu0 0
      %1210 = vmatprep.subr.bf16.mxu0 0
      %1211 = vmatpush2.bf16.msra.mxu0 0
      %1212 = vmatprep.subr.bf16.mxu0 0
      %1213 = vmatpush2.bf16.msra.mxu0 0
      %1214 = vmatprep.subr.bf16.mxu0 0
      %1215 = vmatpush2.bf16.msra.mxu0 0
      %1216 = vmatprep.subr.bf16.mxu0 0
      %1217 = vmatpush2.bf16.msra.mxu0 0
      %1218 = vmatprep.subr.bf16.mxu0 0
      %1219 = vmatpush2.bf16.msra.mxu0 0
      %1220 = vmatprep.subr.bf16.mxu0 0
      %1221 = vmatpush2.bf16.msra.mxu0 0
      %1222 = vmatprep.mubr.bf16.mxu0 0
      %1223 = vmatmul.mubr.bf16.gmra.mxu0 %v1134
      %v1224 = vpop.f32.mrf.mxu0
      %v1225 = vadd.f32 0.0, %v1224
      %v1226 = vpop.f32.mrf.mxu0
      %v1227 = vpop.f32.mrf.mxu0
      %v1228 = vadd.f32 0.0, %v1227
      %v1229 = vpop.f32.mrf.mxu0
      %1230 = vmatprep.mubr.bf16.mxu0 0
      %1231 = vmatmul.mubr.bf16.gmra.mxu0 %v1135
      %v1232 = vpop.f32.mrf.mxu0
      %v1233 = vadd.f32 0.0, %v1232
      %v1234 = vpop.f32.mrf.mxu0
      %v1235 = vpop.f32.mrf.mxu0
      %v1236 = vadd.f32 0.0, %v1235
      %v1237 = vpop.f32.mrf.mxu0
      %1238 = vmatprep.mubr.bf16.mxu0 0
      %1239 = vmatmul.mubr.bf16.gmra.mxu0 %v1136
      %v1240 = vpop.f32.mrf.mxu0
      %v1241 = vadd.f32 0.0, %v1240
      %v1242 = vpop.f32.mrf.mxu0
      %v1243 = vpop.f32.mrf.mxu0
      %v1244 = vadd.f32 0.0, %v1243
      %v1245 = vpop.f32.mrf.mxu0
      %1246 = vmatprep.mubr.bf16.mxu0 0
      %1247 = vmatmul.mubr.bf16.gmra.mxu0 %v1137
      %v1248 = vpop.f32.mrf.mxu0
      %v1249 = vadd.f32 0.0, %v1248
      %v1250 = vpop.f32.mrf.mxu0
      %v1251 = vpop.f32.mrf.mxu0
      %v1252 = vadd.f32 0.0, %v1251
      %v1253 = vpop.f32.mrf.mxu0
      %1254 = vdwg.mxu0
      %v1255 = vadd.f32 %v993, %v1225
      %v1256 = vadd.f32 %v994, %v1228
      %v1257 = vadd.f32 %v995, %v1233
      %v1258 = vadd.f32 %v996, %v1236
      %v1259 = vadd.f32 %v997, %v1241
      %v1260 = vadd.f32 %v998, %v1244
      %v1261 = vadd.f32 %v999, %v1249
      %v1262 = vadd.f32 %v1000, %v1252
      %v1263 = vld [vmem:[%s830] sm:$0xe]
      %v1264 = vld [vmem:[%s830 + $0xc] sm:$0xe]
      %v1265 = vld [vmem:[%s830 + $0x18] sm:$0xe]
      %v1266 = vld [vmem:[%s830 + $0x24] sm:$0xe]
      %v1279 = vrot.slane %v1263, 5
      %v1280 = vrot.slane %v1279, 4
      %v1281 = vrot.slane %v1002, 5
      %v1282 = vsel %vm647, %v1280, %v1281
      %v1283 = vrot.slane %v1281, 4
      %v1284 = vrot.slane %v1003, 5
      %v1285 = vsel %vm647, %v1283, %v1284
      %v1286 = vrot.slane %v1264, 5
      %v1287 = vrot.slane %v1286, 4
      %v1288 = vrot.slane %v1005, 5
      %v1289 = vsel %vm647, %v1287, %v1288
      %v1290 = vrot.slane %v1288, 4
      %v1291 = vrot.slane %v1006, 5
      %v1292 = vsel %vm647, %v1290, %v1291
      %v1293 = vrot.slane %v1265, 5
      %v1294 = vrot.slane %v1293, 4
      %v1295 = vrot.slane %v1008, 5
      %v1296 = vsel %vm647, %v1294, %v1295
      %v1297 = vrot.slane %v1295, 4
      %v1298 = vrot.slane %v1009, 5
      %v1299 = vsel %vm647, %v1297, %v1298
      %v1300 = vrot.slane %v1266, 5
      %v1301 = vrot.slane %v1300, 4
      %v1302 = vrot.slane %v1011, 5
      %v1303 = vsel %vm647, %v1301, %v1302
      %v1304 = vrot.slane %v1302, 4
      %v1305 = vrot.slane %v1012, 5
      %v1306 = vsel %vm647, %v1304, %v1305
      %s1307 = scalar_lea.vmem %s210, 320
      %v1308 = vld [vmem:[%s1307] sm:$0xf]
      %v1309 = vld [vmem:[%s1307 + $0x4] sm:$0xf]
      %v1310 = vld [vmem:[%s1307 + $0x8] sm:$0xf]
      %v1311 = vld [vmem:[%s1307 + $0xc] sm:$0xf]
      %v1312 = vld [vmem:[%s1307 + $0x10] sm:$0xf]
      %v1313 = vld [vmem:[%s1307 + $0x14] sm:$0xf]
      %v1314 = vld [vmem:[%s1307 + $0x18] sm:$0xf]
      %v1315 = vld [vmem:[%s1307 + $0x1c] sm:$0xf]
      %v1316 = vld [vmem:[%s1307 + $0x20] sm:$0xf]
      %v1317 = vld [vmem:[%s1307 + $0x24] sm:$0xf]
      %v1318 = vld [vmem:[%s1307 + $0x28] sm:$0xf]
      %v1319 = vld [vmem:[%s1307 + $0x2c] sm:$0xf]
      %v1320 = vld [vmem:[%s1307 + $0x30] sm:$0xf]
      %v1321 = vld [vmem:[%s1307 + $0x34] sm:$0xf]
      %v1322 = vld [vmem:[%s1307 + $0x38] sm:$0xf]
      %v1323 = vld [vmem:[%s1307 + $0x3c] sm:$0xf]
      %v1324 = vunpack.c.l.b16 %v1282
      %v1325 = vunpack.c.l.b16 %v1285
      %v1326 = vunpack.c.l.b16 %v1289
      %v1327 = vunpack.c.l.b16 %v1292
      %v1328 = vunpack.c.l.b16 %v1296
      %v1329 = vunpack.c.l.b16 %v1299
      %v1330 = vunpack.c.l.b16 %v1303
      %v1331 = vunpack.c.l.b16 %v1306
      %v1332 = vpack.c.b16 %v1325, %v1324
      %v1333 = vpack.c.b16 %v1327, %v1326
      %v1334 = vpack.c.b16 %v1329, %v1328
      %v1335 = vpack.c.b16 %v1331, %v1330
      %v1356 = vunpack.c.l.b16 %v1308
      %v1357 = vunpack.c.l.b16 %v1309
      %v1358 = vunpack.c.l.b16 %v1310
      %v1359 = vunpack.c.l.b16 %v1311
      %v1360 = vunpack.c.l.b16 %v1312
      %v1361 = vunpack.c.l.b16 %v1313
      %v1362 = vunpack.c.l.b16 %v1314
      %v1363 = vunpack.c.l.b16 %v1315
      %v1364 = vunpack.c.l.b16 %v1316
      %v1365 = vunpack.c.l.b16 %v1317
      %v1366 = vunpack.c.l.b16 %v1318
      %v1367 = vunpack.c.l.b16 %v1319
      %v1368 = vunpack.c.l.b16 %v1320
      %v1369 = vunpack.c.l.b16 %v1321
      %v1370 = vunpack.c.l.b16 %v1322
      %v1371 = vunpack.c.l.b16 %v1323
      %v1372 = vpack.c.b16 %v1357, %v1356
      %v1373 = vpack.c.b16 %v1359, %v1358
      %v1374 = vpack.c.b16 %v1361, %v1360
      %v1375 = vpack.c.b16 %v1363, %v1362
      %v1376 = vpack.c.b16 %v1365, %v1364
      %v1377 = vpack.c.b16 %v1367, %v1366
      %v1378 = vpack.c.b16 %v1369, %v1368
      %v1379 = vpack.c.b16 %v1371, %v1370
      %1388 = vmatprep.subr.bf16.mxu0 0
      %1389 = vmatpush1.bf16.msra.mxu0 %v1379
      %1390 = vmatprep.subr.bf16.mxu0 0
      %1391 = vmatpush1.bf16.msra.mxu0 %v1378
      %1392 = vmatprep.subr.bf16.mxu0 0
      %1393 = vmatpush1.bf16.msra.mxu0 %v1377
      %1394 = vmatprep.subr.bf16.mxu0 0
      %1395 = vmatpush1.bf16.msra.mxu0 %v1376
      %1396 = vmatprep.subr.bf16.mxu0 0
      %1397 = vmatpush1.bf16.msra.mxu0 %v1375
      %1398 = vmatprep.subr.bf16.mxu0 0
      %1399 = vmatpush1.bf16.msra.mxu0 %v1374
      %1400 = vmatprep.subr.bf16.mxu0 0
      %1401 = vmatpush1.bf16.msra.mxu0 %v1373
      %1402 = vmatprep.subr.bf16.mxu0 0
      %1403 = vmatpush1.bf16.msra.mxu0 %v1372
      %1404 = vmatprep.subr.bf16.mxu0 0
      %1405 = vmatpush2.bf16.msra.mxu0 0
      %1406 = vmatprep.subr.bf16.mxu0 0
      %1407 = vmatpush2.bf16.msra.mxu0 0
      %1408 = vmatprep.subr.bf16.mxu0 0
      %1409 = vmatpush2.bf16.msra.mxu0 0
      %1410 = vmatprep.subr.bf16.mxu0 0
      %1411 = vmatpush2.bf16.msra.mxu0 0
      %1412 = vmatprep.subr.bf16.mxu0 0
      %1413 = vmatpush2.bf16.msra.mxu0 0
      %1414 = vmatprep.subr.bf16.mxu0 0
      %1415 = vmatpush2.bf16.msra.mxu0 0
      %1416 = vmatprep.subr.bf16.mxu0 0
      %1417 = vmatpush2.bf16.msra.mxu0 0
      %1418 = vmatprep.subr.bf16.mxu0 0
      %1419 = vmatpush2.bf16.msra.mxu0 0
      %1420 = vmatprep.mubr.bf16.mxu0 0
      %1421 = vmatmul.mubr.bf16.gmra.mxu0 %v1332
      %v1422 = vpop.f32.mrf.mxu0
      %v1423 = vadd.f32 0.0, %v1422
      %v1424 = vpop.f32.mrf.mxu0
      %v1425 = vpop.f32.mrf.mxu0
      %v1426 = vadd.f32 0.0, %v1425
      %v1427 = vpop.f32.mrf.mxu0
      %1428 = vmatprep.mubr.bf16.mxu0 0
      %1429 = vmatmul.mubr.bf16.gmra.mxu0 %v1333
      %v1430 = vpop.f32.mrf.mxu0
      %v1431 = vadd.f32 0.0, %v1430
      %v1432 = vpop.f32.mrf.mxu0
      %v1433 = vpop.f32.mrf.mxu0
      %v1434 = vadd.f32 0.0, %v1433
      %v1435 = vpop.f32.mrf.mxu0
      %1436 = vmatprep.mubr.bf16.mxu0 0
      %1437 = vmatmul.mubr.bf16.gmra.mxu0 %v1334
      %v1438 = vpop.f32.mrf.mxu0
      %v1439 = vadd.f32 0.0, %v1438
      %v1440 = vpop.f32.mrf.mxu0
      %v1441 = vpop.f32.mrf.mxu0
      %v1442 = vadd.f32 0.0, %v1441
      %v1443 = vpop.f32.mrf.mxu0
      %1444 = vmatprep.mubr.bf16.mxu0 0
      %1445 = vmatmul.mubr.bf16.gmra.mxu0 %v1335
      %v1446 = vpop.f32.mrf.mxu0
      %v1447 = vadd.f32 0.0, %v1446
      %v1448 = vpop.f32.mrf.mxu0
      %v1449 = vpop.f32.mrf.mxu0
      %v1450 = vadd.f32 0.0, %v1449
      %v1451 = vpop.f32.mrf.mxu0
      %1452 = vdwg.mxu0
      %v1453 = vadd.f32 %v1255, %v1423
      %v1454 = vadd.f32 %v1256, %v1426
      %v1455 = vadd.f32 %v1257, %v1431
      %v1456 = vadd.f32 %v1258, %v1434
      %v1457 = vadd.f32 %v1259, %v1439
      %v1458 = vadd.f32 %v1260, %v1442
      %v1459 = vadd.f32 %v1261, %v1447
      %v1460 = vadd.f32 %v1262, %v1450
      %s1461 = scalar_lea.vmem %s206, 24
      %v1462 = vld [vmem:[%s1461] sm:$0xf]
      %v1463 = vld [vmem:[%s1461 + $0x4] sm:$0xf]
      %v1464 = vld [vmem:[%s1461 + $0xc] sm:$0xf]
      %v1465 = vld [vmem:[%s1461 + $0x10] sm:$0xf]
      %v1466 = vld [vmem:[%s1461 + $0x18] sm:$0xf]
      %v1467 = vld [vmem:[%s1461 + $0x1c] sm:$0xf]
      %v1468 = vld [vmem:[%s1461 + $0x24] sm:$0xf]
      %v1469 = vld [vmem:[%s1461 + $0x28] sm:$0xf]
      %s1470 = scalar_lea.vmem %s210, 384
      %v1471 = vld [vmem:[%s1470] sm:$0xf]
      %v1472 = vld [vmem:[%s1470 + $0x4] sm:$0xf]
      %v1473 = vld [vmem:[%s1470 + $0x8] sm:$0xf]
      %v1474 = vld [vmem:[%s1470 + $0xc] sm:$0xf]
      %v1475 = vld [vmem:[%s1470 + $0x10] sm:$0xf]
      %v1476 = vld [vmem:[%s1470 + $0x14] sm:$0xf]
      %v1477 = vld [vmem:[%s1470 + $0x18] sm:$0xf]
      %v1478 = vld [vmem:[%s1470 + $0x1c] sm:$0xf]
      %v1479 = vld [vmem:[%s1470 + $0x20] sm:$0xf]
      %v1480 = vld [vmem:[%s1470 + $0x24] sm:$0xf]
      %v1481 = vld [vmem:[%s1470 + $0x28] sm:$0xf]
      %v1482 = vld [vmem:[%s1470 + $0x2c] sm:$0xf]
      %v1483 = vld [vmem:[%s1470 + $0x30] sm:$0xf]
      %v1484 = vld [vmem:[%s1470 + $0x34] sm:$0xf]
      %v1485 = vld [vmem:[%s1470 + $0x38] sm:$0xf]
      %v1486 = vld [vmem:[%s1470 + $0x3c] sm:$0xf]
      %v1495 = vunpack.c.l.b16 %v1462
      %v1496 = vunpack.c.l.b16 %v1463
      %v1497 = vunpack.c.l.b16 %v1464
      %v1498 = vunpack.c.l.b16 %v1465
      %v1499 = vunpack.c.l.b16 %v1466
      %v1500 = vunpack.c.l.b16 %v1467
      %v1501 = vunpack.c.l.b16 %v1468
      %v1502 = vunpack.c.l.b16 %v1469
      %v1503 = vpack.c.b16 %v1496, %v1495
      %v1504 = vpack.c.b16 %v1498, %v1497
      %v1505 = vpack.c.b16 %v1500, %v1499
      %v1506 = vpack.c.b16 %v1502, %v1501
      %v1527 = vunpack.c.l.b16 %v1471
      %v1528 = vunpack.c.l.b16 %v1472
      %v1529 = vunpack.c.l.b16 %v1473
      %v1530 = vunpack.c.l.b16 %v1474
      %v1531 = vunpack.c.l.b16 %v1475
      %v1532 = vunpack.c.l.b16 %v1476
      %v1533 = vunpack.c.l.b16 %v1477
      %v1534 = vunpack.c.l.b16 %v1478
      %v1535 = vunpack.c.l.b16 %v1479
      %v1536 = vunpack.c.l.b16 %v1480
      %v1537 = vunpack.c.l.b16 %v1481
      %v1538 = vunpack.c.l.b16 %v1482
      %v1539 = vunpack.c.l.b16 %v1483
      %v1540 = vunpack.c.l.b16 %v1484
      %v1541 = vunpack.c.l.b16 %v1485
      %v1542 = vunpack.c.l.b16 %v1486
      %v1543 = vpack.c.b16 %v1528, %v1527
      %v1544 = vpack.c.b16 %v1530, %v1529
      %v1545 = vpack.c.b16 %v1532, %v1531
      %v1546 = vpack.c.b16 %v1534, %v1533
      %v1547 = vpack.c.b16 %v1536, %v1535
      %v1548 = vpack.c.b16 %v1538, %v1537
      %v1549 = vpack.c.b16 %v1540, %v1539
      %v1550 = vpack.c.b16 %v1542, %v1541
      %1559 = vmatprep.subr.bf16.mxu0 0
      %1560 = vmatpush1.bf16.msra.mxu0 %v1550
      %1561 = vmatprep.subr.bf16.mxu0 0
      %1562 = vmatpush1.bf16.msra.mxu0 %v1549
      %1563 = vmatprep.subr.bf16.mxu0 0
      %1564 = vmatpush1.bf16.msra.mxu0 %v1548
      %1565 = vmatprep.subr.bf16.mxu0 0
      %1566 = vmatpush1.bf16.msra.mxu0 %v1547
      %1567 = vmatprep.subr.bf16.mxu0 0
      %1568 = vmatpush1.bf16.msra.mxu0 %v1546
      %1569 = vmatprep.subr.bf16.mxu0 0
      %1570 = vmatpush1.bf16.msra.mxu0 %v1545
      %1571 = vmatprep.subr.bf16.mxu0 0
      %1572 = vmatpush1.bf16.msra.mxu0 %v1544
      %1573 = vmatprep.subr.bf16.mxu0 0
      %1574 = vmatpush1.bf16.msra.mxu0 %v1543
      %1575 = vmatprep.subr.bf16.mxu0 0
      %1576 = vmatpush2.bf16.msra.mxu0 0
      %1577 = vmatprep.subr.bf16.mxu0 0
      %1578 = vmatpush2.bf16.msra.mxu0 0
      %1579 = vmatprep.subr.bf16.mxu0 0
      %1580 = vmatpush2.bf16.msra.mxu0 0
      %1581 = vmatprep.subr.bf16.mxu0 0
      %1582 = vmatpush2.bf16.msra.mxu0 0
      %1583 = vmatprep.subr.bf16.mxu0 0
      %1584 = vmatpush2.bf16.msra.mxu0 0
      %1585 = vmatprep.subr.bf16.mxu0 0
      %1586 = vmatpush2.bf16.msra.mxu0 0
      %1587 = vmatprep.subr.bf16.mxu0 0
      %1588 = vmatpush2.bf16.msra.mxu0 0
      %1589 = vmatprep.subr.bf16.mxu0 0
      %1590 = vmatpush2.bf16.msra.mxu0 0
      %1591 = vmatprep.mubr.bf16.mxu0 0
      %1592 = vmatmul.mubr.bf16.gmra.mxu0 %v1503
      %v1593 = vpop.f32.mrf.mxu0
      %v1594 = vadd.f32 0.0, %v1593
      %v1595 = vpop.f32.mrf.mxu0
      %v1596 = vpop.f32.mrf.mxu0
      %v1597 = vadd.f32 0.0, %v1596
      %v1598 = vpop.f32.mrf.mxu0
      %1599 = vmatprep.mubr.bf16.mxu0 0
      %1600 = vmatmul.mubr.bf16.gmra.mxu0 %v1504
      %v1601 = vpop.f32.mrf.mxu0
      %v1602 = vadd.f32 0.0, %v1601
      %v1603 = vpop.f32.mrf.mxu0
      %v1604 = vpop.f32.mrf.mxu0
      %v1605 = vadd.f32 0.0, %v1604
      %v1606 = vpop.f32.mrf.mxu0
      %1607 = vmatprep.mubr.bf16.mxu0 0
      %1608 = vmatmul.mubr.bf16.gmra.mxu0 %v1505
      %v1609 = vpop.f32.mrf.mxu0
      %v1610 = vadd.f32 0.0, %v1609
      %v1611 = vpop.f32.mrf.mxu0
      %v1612 = vpop.f32.mrf.mxu0
      %v1613 = vadd.f32 0.0, %v1612
      %v1614 = vpop.f32.mrf.mxu0
      %1615 = vmatprep.mubr.bf16.mxu0 0
      %1616 = vmatmul.mubr.bf16.gmra.mxu0 %v1506
      %v1617 = vpop.f32.mrf.mxu0
      %v1618 = vadd.f32 0.0, %v1617
      %v1619 = vpop.f32.mrf.mxu0
      %v1620 = vpop.f32.mrf.mxu0
      %v1621 = vadd.f32 0.0, %v1620
      %v1622 = vpop.f32.mrf.mxu0
      %1623 = vdwg.mxu0
      %v1624 = vadd.f32 %v1453, %v1594
      %v1625 = vadd.f32 %v1454, %v1597
      %v1626 = vadd.f32 %v1455, %v1602
      %v1627 = vadd.f32 %v1456, %v1605
      %v1628 = vadd.f32 %v1457, %v1610
      %v1629 = vadd.f32 %v1458, %v1613
      %v1630 = vadd.f32 %v1459, %v1618
      %v1631 = vadd.f32 %v1460, %v1621
      %v1632 = vld [vmem:[%s1461] sm:$0xf]
      %v1633 = vld [vmem:[%s1461 + $0x4] sm:$0xf]
      %v1634 = vld [vmem:[%s1461 + $0x8] sm:$0x1]
      %v1635 = vld [vmem:[%s1461 + $0xc] sm:$0xf]
      %v1636 = vld [vmem:[%s1461 + $0x10] sm:$0xf]
      %v1637 = vld [vmem:[%s1461 + $0x14] sm:$0x1]
      %v1638 = vld [vmem:[%s1461 + $0x18] sm:$0xf]
      %v1639 = vld [vmem:[%s1461 + $0x1c] sm:$0xf]
      %v1640 = vld [vmem:[%s1461 + $0x20] sm:$0x1]
      %v1641 = vld [vmem:[%s1461 + $0x24] sm:$0xf]
      %v1642 = vld [vmem:[%s1461 + $0x28] sm:$0xf]
      %v1643 = vld [vmem:[%s1461 + $0x2c] sm:$0x1]
      %v1645 = vshrl.u32 %v1632, 16
      %v1647 = vrot.slane %v1645, 4
      %v1648 = vshll.u32 %v1632, 16
      %v1650 = vrot.slane %v1648, 5
      %v1651 = vor.u32 %v1647, %v1650
      %v1652 = vrot.slane %v1651, 4
      %v1654 = vshll.u32 %v1633, 16
      %v1656 = vrot.slane %v1654, 5
      %v1657 = vsel %vm253, %v1652, %v1656
      %v1658 = vshrl.u32 %v1633, 16
      %v1660 = vrot.slane %v1658, 4
      %v1661 = vor.u32 %v1660, %v1656
      %v1662 = vrot.slane %v1661, 4
      %v1664 = vshll.u32 %v1634, 16
      %v1666 = vrot.slane %v1664, 5
      %v1667 = vsel %vm253, %v1662, %v1666
      %v1669 = vshrl.u32 %v1635, 16
      %v1671 = vrot.slane %v1669, 4
      %v1672 = vshll.u32 %v1635, 16
      %v1674 = vrot.slane %v1672, 5
      %v1675 = vor.u32 %v1671, %v1674
      %v1676 = vrot.slane %v1675, 4
      %v1678 = vshll.u32 %v1636, 16
      %v1680 = vrot.slane %v1678, 5
      %v1681 = vsel %vm253, %v1676, %v1680
      %v1682 = vshrl.u32 %v1636, 16
      %v1684 = vrot.slane %v1682, 4
      %v1685 = vor.u32 %v1684, %v1680
      %v1686 = vrot.slane %v1685, 4
      %v1688 = vshll.u32 %v1637, 16
      %v1690 = vrot.slane %v1688, 5
      %v1691 = vsel %vm253, %v1686, %v1690
      %v1693 = vshrl.u32 %v1638, 16
      %v1695 = vrot.slane %v1693, 4
      %v1696 = vshll.u32 %v1638, 16
      %v1698 = vrot.slane %v1696, 5
      %v1699 = vor.u32 %v1695, %v1698
      %v1700 = vrot.slane %v1699, 4
      %v1702 = vshll.u32 %v1639, 16
      %v1704 = vrot.slane %v1702, 5
      %v1705 = vsel %vm253, %v1700, %v1704
      %v1706 = vshrl.u32 %v1639, 16
      %v1708 = vrot.slane %v1706, 4
      %v1709 = vor.u32 %v1708, %v1704
      %v1710 = vrot.slane %v1709, 4
      %v1712 = vshll.u32 %v1640, 16
      %v1714 = vrot.slane %v1712, 5
      %v1715 = vsel %vm253, %v1710, %v1714
      %v1717 = vshrl.u32 %v1641, 16
      %v1719 = vrot.slane %v1717, 4
      %v1720 = vshll.u32 %v1641, 16
      %v1722 = vrot.slane %v1720, 5
      %v1723 = vor.u32 %v1719, %v1722
      %v1724 = vrot.slane %v1723, 4
      %v1726 = vshll.u32 %v1642, 16
      %v1728 = vrot.slane %v1726, 5
      %v1729 = vsel %vm253, %v1724, %v1728
      %v1730 = vshrl.u32 %v1642, 16
      %v1732 = vrot.slane %v1730, 4
      %v1733 = vor.u32 %v1732, %v1728
      %v1734 = vrot.slane %v1733, 4
      %v1736 = vshll.u32 %v1643, 16
      %v1738 = vrot.slane %v1736, 5
      %v1739 = vsel %vm253, %v1734, %v1738
      %s1740 = scalar_lea.vmem %s210, 448
      %v1741 = vld [vmem:[%s1740] sm:$0xf]
      %v1742 = vld [vmem:[%s1740 + $0x4] sm:$0xf]
      %v1743 = vld [vmem:[%s1740 + $0x8] sm:$0xf]
      %v1744 = vld [vmem:[%s1740 + $0xc] sm:$0xf]
      %v1745 = vld [vmem:[%s1740 + $0x10] sm:$0xf]
      %v1746 = vld [vmem:[%s1740 + $0x14] sm:$0xf]
      %v1747 = vld [vmem:[%s1740 + $0x18] sm:$0xf]
      %v1748 = vld [vmem:[%s1740 + $0x1c] sm:$0xf]
      %v1749 = vld [vmem:[%s1740 + $0x20] sm:$0xf]
      %v1750 = vld [vmem:[%s1740 + $0x24] sm:$0xf]
      %v1751 = vld [vmem:[%s1740 + $0x28] sm:$0xf]
      %v1752 = vld [vmem:[%s1740 + $0x2c] sm:$0xf]
      %v1753 = vld [vmem:[%s1740 + $0x30] sm:$0xf]
      %v1754 = vld [vmem:[%s1740 + $0x34] sm:$0xf]
      %v1755 = vld [vmem:[%s1740 + $0x38] sm:$0xf]
      %v1756 = vld [vmem:[%s1740 + $0x3c] sm:$0xf]
      %v1757 = vunpack.c.l.b16 %v1657
      %v1758 = vunpack.c.l.b16 %v1667
      %v1759 = vunpack.c.l.b16 %v1681
      %v1760 = vunpack.c.l.b16 %v1691
      %v1761 = vunpack.c.l.b16 %v1705
      %v1762 = vunpack.c.l.b16 %v1715
      %v1763 = vunpack.c.l.b16 %v1729
      %v1764 = vunpack.c.l.b16 %v1739
      %v1765 = vpack.c.b16 %v1758, %v1757
      %v1766 = vpack.c.b16 %v1760, %v1759
      %v1767 = vpack.c.b16 %v1762, %v1761
      %v1768 = vpack.c.b16 %v1764, %v1763
      %v1789 = vunpack.c.l.b16 %v1741
      %v1790 = vunpack.c.l.b16 %v1742
      %v1791 = vunpack.c.l.b16 %v1743
      %v1792 = vunpack.c.l.b16 %v1744
      %v1793 = vunpack.c.l.b16 %v1745
      %v1794 = vunpack.c.l.b16 %v1746
      %v1795 = vunpack.c.l.b16 %v1747
      %v1796 = vunpack.c.l.b16 %v1748
      %v1797 = vunpack.c.l.b16 %v1749
      %v1798 = vunpack.c.l.b16 %v1750
      %v1799 = vunpack.c.l.b16 %v1751
      %v1800 = vunpack.c.l.b16 %v1752
      %v1801 = vunpack.c.l.b16 %v1753
      %v1802 = vunpack.c.l.b16 %v1754
      %v1803 = vunpack.c.l.b16 %v1755
      %v1804 = vunpack.c.l.b16 %v1756
      %v1805 = vpack.c.b16 %v1790, %v1789
      %v1806 = vpack.c.b16 %v1792, %v1791
      %v1807 = vpack.c.b16 %v1794, %v1793
      %v1808 = vpack.c.b16 %v1796, %v1795
      %v1809 = vpack.c.b16 %v1798, %v1797
      %v1810 = vpack.c.b16 %v1800, %v1799
      %v1811 = vpack.c.b16 %v1802, %v1801
      %v1812 = vpack.c.b16 %v1804, %v1803
      %1821 = vmatprep.subr.bf16.mxu0 0
      %1822 = vmatpush1.bf16.msra.mxu0 %v1812
      %1823 = vmatprep.subr.bf16.mxu0 0
      %1824 = vmatpush1.bf16.msra.mxu0 %v1811
      %1825 = vmatprep.subr.bf16.mxu0 0
      %1826 = vmatpush1.bf16.msra.mxu0 %v1810
      %1827 = vmatprep.subr.bf16.mxu0 0
      %1828 = vmatpush1.bf16.msra.mxu0 %v1809
      %1829 = vmatprep.subr.bf16.mxu0 0
      %1830 = vmatpush1.bf16.msra.mxu0 %v1808
      %1831 = vmatprep.subr.bf16.mxu0 0
      %1832 = vmatpush1.bf16.msra.mxu0 %v1807
      %1833 = vmatprep.subr.bf16.mxu0 0
      %1834 = vmatpush1.bf16.msra.mxu0 %v1806
      %1835 = vmatprep.subr.bf16.mxu0 0
      %1836 = vmatpush1.bf16.msra.mxu0 %v1805
      %1837 = vmatprep.subr.bf16.mxu0 0
      %1838 = vmatpush2.bf16.msra.mxu0 0
      %1839 = vmatprep.subr.bf16.mxu0 0
      %1840 = vmatpush2.bf16.msra.mxu0 0
      %1841 = vmatprep.subr.bf16.mxu0 0
      %1842 = vmatpush2.bf16.msra.mxu0 0
      %1843 = vmatprep.subr.bf16.mxu0 0
      %1844 = vmatpush2.bf16.msra.mxu0 0
      %1845 = vmatprep.subr.bf16.mxu0 0
      %1846 = vmatpush2.bf16.msra.mxu0 0
      %1847 = vmatprep.subr.bf16.mxu0 0
      %1848 = vmatpush2.bf16.msra.mxu0 0
      %1849 = vmatprep.subr.bf16.mxu0 0
      %1850 = vmatpush2.bf16.msra.mxu0 0
      %1851 = vmatprep.subr.bf16.mxu0 0
      %1852 = vmatpush2.bf16.msra.mxu0 0
      %1853 = vmatprep.mubr.bf16.mxu0 0
      %1854 = vmatmul.mubr.bf16.gmra.mxu0 %v1765
      %v1855 = vpop.f32.mrf.mxu0
      %v1856 = vadd.f32 0.0, %v1855
      %v1857 = vpop.f32.mrf.mxu0
      %v1858 = vpop.f32.mrf.mxu0
      %v1859 = vadd.f32 0.0, %v1858
      %v1860 = vpop.f32.mrf.mxu0
      %1861 = vmatprep.mubr.bf16.mxu0 0
      %1862 = vmatmul.mubr.bf16.gmra.mxu0 %v1766
      %v1863 = vpop.f32.mrf.mxu0
      %v1864 = vadd.f32 0.0, %v1863
      %v1865 = vpop.f32.mrf.mxu0
      %v1866 = vpop.f32.mrf.mxu0
      %v1867 = vadd.f32 0.0, %v1866
      %v1868 = vpop.f32.mrf.mxu0
      %1869 = vmatprep.mubr.bf16.mxu0 0
      %1870 = vmatmul.mubr.bf16.gmra.mxu0 %v1767
      %v1871 = vpop.f32.mrf.mxu0
      %v1872 = vadd.f32 0.0, %v1871
      %v1873 = vpop.f32.mrf.mxu0
      %v1874 = vpop.f32.mrf.mxu0
      %v1875 = vadd.f32 0.0, %v1874
      %v1876 = vpop.f32.mrf.mxu0
      %1877 = vmatprep.mubr.bf16.mxu0 0
      %1878 = vmatmul.mubr.bf16.gmra.mxu0 %v1768
      %v1879 = vpop.f32.mrf.mxu0
      %v1880 = vadd.f32 0.0, %v1879
      %v1881 = vpop.f32.mrf.mxu0
      %v1882 = vpop.f32.mrf.mxu0
      %v1883 = vadd.f32 0.0, %v1882
      %v1884 = vpop.f32.mrf.mxu0
      %1885 = vdwg.mxu0
      %v1886 = vadd.f32 %v1624, %v1856
      %v1887 = vadd.f32 %v1625, %v1859
      %v1888 = vadd.f32 %v1626, %v1864
      %v1889 = vadd.f32 %v1627, %v1867
      %v1890 = vadd.f32 %v1628, %v1872
      %v1891 = vadd.f32 %v1629, %v1875
      %v1892 = vadd.f32 %v1630, %v1880
      %v1893 = vadd.f32 %v1631, %v1883
      %v1894 = vld [vmem:[%s1461] sm:$0xe]
      %v1895 = vld [vmem:[%s1461 + $0xc] sm:$0xe]
      %v1896 = vld [vmem:[%s1461 + $0x18] sm:$0xe]
      %v1897 = vld [vmem:[%s1461 + $0x24] sm:$0xe]
      %v1910 = vrot.slane %v1894, 5
      %v1911 = vrot.slane %v1910, 4
      %v1912 = vrot.slane %v1633, 5
      %v1913 = vsel %vm647, %v1911, %v1912
      %v1914 = vrot.slane %v1912, 4
      %v1915 = vrot.slane %v1634, 5
      %v1916 = vsel %vm647, %v1914, %v1915
      %v1917 = vrot.slane %v1895, 5
      %v1918 = vrot.slane %v1917, 4
      %v1919 = vrot.slane %v1636, 5
      %v1920 = vsel %vm647, %v1918, %v1919
      %v1921 = vrot.slane %v1919, 4
      %v1922 = vrot.slane %v1637, 5
      %v1923 = vsel %vm647, %v1921, %v1922
      %v1924 = vrot.slane %v1896, 5
      %v1925 = vrot.slane %v1924, 4
      %v1926 = vrot.slane %v1639, 5
      %v1927 = vsel %vm647, %v1925, %v1926
      %v1928 = vrot.slane %v1926, 4
      %v1929 = vrot.slane %v1640, 5
      %v1930 = vsel %vm647, %v1928, %v1929
      %v1931 = vrot.slane %v1897, 5
      %v1932 = vrot.slane %v1931, 4
      %v1933 = vrot.slane %v1642, 5
      %v1934 = vsel %vm647, %v1932, %v1933
      %v1935 = vrot.slane %v1933, 4
      %v1936 = vrot.slane %v1643, 5
      %v1937 = vsel %vm647, %v1935, %v1936
      %s1938 = scalar_lea.vmem %s210, 512
      %v1939 = vld [vmem:[%s1938] sm:$0xf]
      %v1940 = vld [vmem:[%s1938 + $0x4] sm:$0xf]
      %v1941 = vld [vmem:[%s1938 + $0x8] sm:$0xf]
      %v1942 = vld [vmem:[%s1938 + $0xc] sm:$0xf]
      %v1943 = vld [vmem:[%s1938 + $0x10] sm:$0xf]
      %v1944 = vld [vmem:[%s1938 + $0x14] sm:$0xf]
      %v1945 = vld [vmem:[%s1938 + $0x18] sm:$0xf]
      %v1946 = vld [vmem:[%s1938 + $0x1c] sm:$0xf]
      %v1947 = vld [vmem:[%s1938 + $0x20] sm:$0xf]
      %v1948 = vld [vmem:[%s1938 + $0x24] sm:$0xf]
      %v1949 = vld [vmem:[%s1938 + $0x28] sm:$0xf]
      %v1950 = vld [vmem:[%s1938 + $0x2c] sm:$0xf]
      %v1951 = vld [vmem:[%s1938 + $0x30] sm:$0xf]
      %v1952 = vld [vmem:[%s1938 + $0x34] sm:$0xf]
      %v1953 = vld [vmem:[%s1938 + $0x38] sm:$0xf]
      %v1954 = vld [vmem:[%s1938 + $0x3c] sm:$0xf]
      %v1955 = vunpack.c.l.b16 %v1913
      %v1956 = vunpack.c.l.b16 %v1916
      %v1957 = vunpack.c.l.b16 %v1920
      %v1958 = vunpack.c.l.b16 %v1923
      %v1959 = vunpack.c.l.b16 %v1927
      %v1960 = vunpack.c.l.b16 %v1930
      %v1961 = vunpack.c.l.b16 %v1934
      %v1962 = vunpack.c.l.b16 %v1937
      %v1963 = vpack.c.b16 %v1956, %v1955
      %v1964 = vpack.c.b16 %v1958, %v1957
      %v1965 = vpack.c.b16 %v1960, %v1959
      %v1966 = vpack.c.b16 %v1962, %v1961
      %v1987 = vunpack.c.l.b16 %v1939
      %v1988 = vunpack.c.l.b16 %v1940
      %v1989 = vunpack.c.l.b16 %v1941
      %v1990 = vunpack.c.l.b16 %v1942
      %v1991 = vunpack.c.l.b16 %v1943
      %v1992 = vunpack.c.l.b16 %v1944
      %v1993 = vunpack.c.l.b16 %v1945
      %v1994 = vunpack.c.l.b16 %v1946
      %v1995 = vunpack.c.l.b16 %v1947
      %v1996 = vunpack.c.l.b16 %v1948
      %v1997 = vunpack.c.l.b16 %v1949
      %v1998 = vunpack.c.l.b16 %v1950
      %v1999 = vunpack.c.l.b16 %v1951
      %v2000 = vunpack.c.l.b16 %v1952
      %v2001 = vunpack.c.l.b16 %v1953
      %v2002 = vunpack.c.l.b16 %v1954
      %v2003 = vpack.c.b16 %v1988, %v1987
      %v2004 = vpack.c.b16 %v1990, %v1989
      %v2005 = vpack.c.b16 %v1992, %v1991
      %v2006 = vpack.c.b16 %v1994, %v1993
      %v2007 = vpack.c.b16 %v1996, %v1995
      %v2008 = vpack.c.b16 %v1998, %v1997
      %v2009 = vpack.c.b16 %v2000, %v1999
      %v2010 = vpack.c.b16 %v2002, %v2001
      %2019 = vmatprep.subr.bf16.mxu0 0
      %2020 = vmatpush1.bf16.msra.mxu0 %v2010
      %2021 = vmatprep.subr.bf16.mxu0 0
      %2022 = vmatpush1.bf16.msra.mxu0 %v2009
      %2023 = vmatprep.subr.bf16.mxu0 0
      %2024 = vmatpush1.bf16.msra.mxu0 %v2008
      %2025 = vmatprep.subr.bf16.mxu0 0
      %2026 = vmatpush1.bf16.msra.mxu0 %v2007
      %2027 = vmatprep.subr.bf16.mxu0 0
      %2028 = vmatpush1.bf16.msra.mxu0 %v2006
      %2029 = vmatprep.subr.bf16.mxu0 0
      %2030 = vmatpush1.bf16.msra.mxu0 %v2005
      %2031 = vmatprep.subr.bf16.mxu0 0
      %2032 = vmatpush1.bf16.msra.mxu0 %v2004
      %2033 = vmatprep.subr.bf16.mxu0 0
      %2034 = vmatpush1.bf16.msra.mxu0 %v2003
      %2035 = vmatprep.subr.bf16.mxu0 0
      %2036 = vmatpush2.bf16.msra.mxu0 0
      %2037 = vmatprep.subr.bf16.mxu0 0
      %2038 = vmatpush2.bf16.msra.mxu0 0
      %2039 = vmatprep.subr.bf16.mxu0 0
      %2040 = vmatpush2.bf16.msra.mxu0 0
      %2041 = vmatprep.subr.bf16.mxu0 0
      %2042 = vmatpush2.bf16.msra.mxu0 0
      %2043 = vmatprep.subr.bf16.mxu0 0
      %2044 = vmatpush2.bf16.msra.mxu0 0
      %2045 = vmatprep.subr.bf16.mxu0 0
      %2046 = vmatpush2.bf16.msra.mxu0 0
      %2047 = vmatprep.subr.bf16.mxu0 0
      %2048 = vmatpush2.bf16.msra.mxu0 0
      %2049 = vmatprep.subr.bf16.mxu0 0
      %2050 = vmatpush2.bf16.msra.mxu0 0
      %2051 = vmatprep.mubr.bf16.mxu0 0
      %2052 = vmatmul.mubr.bf16.gmra.mxu0 %v1963
      %v2053 = vpop.f32.mrf.mxu0
      %v2054 = vadd.f32 0.0, %v2053
      %v2055 = vpop.f32.mrf.mxu0
      %v2056 = vpop.f32.mrf.mxu0
      %v2057 = vadd.f32 0.0, %v2056
      %v2058 = vpop.f32.mrf.mxu0
      %2059 = vmatprep.mubr.bf16.mxu0 0
      %2060 = vmatmul.mubr.bf16.gmra.mxu0 %v1964
      %v2061 = vpop.f32.mrf.mxu0
      %v2062 = vadd.f32 0.0, %v2061
      %v2063 = vpop.f32.mrf.mxu0
      %v2064 = vpop.f32.mrf.mxu0
      %v2065 = vadd.f32 0.0, %v2064
      %v2066 = vpop.f32.mrf.mxu0
      %2067 = vmatprep.mubr.bf16.mxu0 0
      %2068 = vmatmul.mubr.bf16.gmra.mxu0 %v1965
      %v2069 = vpop.f32.mrf.mxu0
      %v2070 = vadd.f32 0.0, %v2069
      %v2071 = vpop.f32.mrf.mxu0
      %v2072 = vpop.f32.mrf.mxu0
      %v2073 = vadd.f32 0.0, %v2072
      %v2074 = vpop.f32.mrf.mxu0
      %2075 = vmatprep.mubr.bf16.mxu0 0
      %2076 = vmatmul.mubr.bf16.gmra.mxu0 %v1966
      %v2077 = vpop.f32.mrf.mxu0
      %v2078 = vadd.f32 0.0, %v2077
      %v2079 = vpop.f32.mrf.mxu0
      %v2080 = vpop.f32.mrf.mxu0
      %v2081 = vadd.f32 0.0, %v2080
      %v2082 = vpop.f32.mrf.mxu0
      %2083 = vdwg.mxu0
      %v2084 = vadd.f32 %v1886, %v2054
      %v2085 = vadd.f32 %v1887, %v2057
      %v2086 = vadd.f32 %v1888, %v2062
      %v2087 = vadd.f32 %v1889, %v2065
      %v2088 = vadd.f32 %v1890, %v2070
      %v2089 = vadd.f32 %v1891, %v2073
      %v2090 = vadd.f32 %v1892, %v2078
      %v2091 = vadd.f32 %v1893, %v2081
      %v2092 = vld [vmem:[%s213] sm:$0x1]
      %v2094 = vlaneseq
      %v2095 = vshrl.u32 %v2094, 7
      %v2096 = vsub.s32 0, %v2095
      %v2097 = vrot.slane %v2092, %v2096
      %v2099 = vadd.f32 %v2084, %v2097
      %v2100 = vadd.f32 %v2085, %v2097
      %v2101 = vadd.f32 %v2086, %v2097
      %v2102 = vadd.f32 %v2087, %v2097
      %v2103 = vadd.f32 %v2088, %v2097
      %v2104 = vadd.f32 %v2089, %v2097
      %v2105 = vadd.f32 %v2090, %v2097
      %v2106 = vadd.f32 %v2091, %v2097
      %v2107 = vmax.f32 %v2099, 0.0
      %v2108 = vmax.f32 %v2100, 0.0
      %v2109 = vmax.f32 %v2101, 0.0
      %v2110 = vmax.f32 %v2102, 0.0
      %v2111 = vmax.f32 %v2103, 0.0
      %v2112 = vmax.f32 %v2104, 0.0
      %v2113 = vmax.f32 %v2105, 0.0
      %v2114 = vmax.f32 %v2106, 0.0
      %v2115 = vpack.c.bf16 %v2108, %v2107
      %v2116 = vpack.c.bf16 %v2110, %v2109
      %v2117 = vpack.c.bf16 %v2112, %v2111
      %v2118 = vpack.c.bf16 %v2114, %v2113
      %v2123 = vunpack.c.l.b16 %v2115
      %v2124 = vunpack.c.h.b16 %v2115
      %v2125 = vunpack.c.l.b16 %v2116
      %v2126 = vunpack.c.h.b16 %v2116
      %v2127 = vunpack.c.l.b16 %v2117
      %v2128 = vunpack.c.h.b16 %v2117
      %v2129 = vunpack.c.l.b16 %v2118
      %v2130 = vunpack.c.h.b16 %v2118
      %v2131 = vpack.c.b16 %v2123, %v2123
      %v2132 = vpack.c.b16 %v2124, %v2124
      %v2133 = vpack.c.b16 %v2125, %v2125
      %v2134 = vpack.c.b16 %v2126, %v2126
      %v2135 = vpack.c.b16 %v2127, %v2127
      %v2136 = vpack.c.b16 %v2128, %v2128
      %v2137 = vpack.c.b16 %v2129, %v2129
      %v2138 = vpack.c.b16 %v2130, %v2130
      %2147 = vst [vmem:[%s221] sm:$0xf] %v2131
      %2148 = vst [vmem:[%s221 + $0x4] sm:$0xf] %v2132
      %2149 = vst [vmem:[%s221 + $0x8] sm:$0xf] %v2133
      %2150 = vst [vmem:[%s221 + $0xc] sm:$0xf] %v2134
      %2151 = vst [vmem:[%s221 + $0x10] sm:$0xf] %v2135
      %2152 = vst [vmem:[%s221 + $0x14] sm:$0xf] %v2136
      %2153 = vst [vmem:[%s221 + $0x18] sm:$0xf] %v2137
      %2154 = vst [vmem:[%s221 + $0x1c] sm:$0xf] %v2138
      %p2155 = scmp.lt.s32.totalorder %s18, 7
      %s2156 = scalar_select %p2155, %s18, 7
      %p2157 = scmp.lt.s32.totalorder %s19, 0
      %s2158 = scalar_select %p2157, %s19, 0
      %s2159 = smul.addr %s2156, 8
      %s2160 = sadd.s32 %s2158, %s2159
      %s2161 = smul.addr %s2160, 4
      %s2162 = scalar_lea.vmem %s3, %s2161
      // Predicated region
      $region33: #{conv_block_forward.2} parent=31 // pred_check
        %p2163 = pneg %p124
      $region34: #{conv_block_forward.2} parent=31 // pred_check_branch
        %2165 = sbr.rel (%p2163) target = $region36
      $region35: #{conv_block_forward.2} parent=31 // pred_region
        _
      $region36: #{conv_block_forward.2} parent=31 // pred_fallthru
        _
    $region32: #{conv_block_forward.2} parent=5 // pred_fallthru
      _
    %p2166 = scmp.le.s32.totalorder 2, %s9
    // Predicated region
    $region37: #{conv_block_forward.2} parent=5 // pred_check
      %p2167 = pneg %p2166
    $region38: #{conv_block_forward.2} parent=5 // pred_check_branch
      %2169 = sbr.rel (%p2167) target = $region40
    $region39: #{conv_block_forward.2} parent=5 // pred_region
      %s2170 = ssub.s32 %s9, 2
      // Predicated region
      $region41: #{conv_block_forward.2} parent=39 // pred_check
        %p2171 = pneg %p130
      $region42: #{conv_block_forward.2} parent=39 // pred_check_branch
        %2173 = sbr.rel (%p2171) target = $region44
      $region43: #{conv_block_forward.2} parent=39 // pred_region
        %p2174 = scmp.lt.s32.totalorder %s20, 7
        %s2175 = scalar_select %p2174, %s20, 7
        %p2176 = scmp.lt.s32.totalorder %s21, 0
        %s2177 = scalar_select %p2176, %s21, 0
        %s2178 = smul.addr %s2175, 8
        %s2179 = sadd.s32 %s2177, %s2178
        %s2180 = smul.addr %s2179, 4
        %s2181 = scalar_lea.vmem %s3, %s2180
      $region44: #{conv_block_forward.2} parent=39 // pred_fallthru
        _
    $region40: #{conv_block_forward.2} parent=5 // pred_fallthru
      _
  $region6: #{conv_block_forward.2} parent=0 // loop_footer
    %s13 = sadd.s32 1, %s9
  $region7: #{conv_block_forward.2} parent=0 // loop_footer_branch
    %8 = sbr.rel target = $region3
  $region8: #{conv_block_forward.2} parent=0 // loop_exit
    _

</llo_original>
